<compile_context>
chip_gen: v7x
topology: tpu7x:2x2x1
jax: 0.10.0
libtpu: 0.0.40
codegen_flags: <defaults>
</compile_context>

<pallas_src>
import jax
import jax.numpy as jnp
import numpy as np
from jax.experimental import pallas as pl
from jax.experimental.pallas import tpu as pltpu


def ff_kernel(x_ref, w1_ref, b1_ref, w2_ref, b2_ref, out_ref, outc_ref):
    j = pl.program_id(1)  # H-tile index

    # Bottleneck: Linear(num_features -> 512) + ReLU (bf16 operands, f32 accum).
    h = jnp.dot(x_ref[...], w1_ref[...], preferred_element_type=jnp.float32)
    h = jnp.maximum(h + b1_ref[...], 0.0)          # bias add + ReLU in f32
    out_ref[...] = h                               # f32 bottleneck output tile

    # Classifier partial: this H-tile's contribution to out @ W2 (+ b2 once).
    c = jnp.dot(h.astype(w2_ref.dtype), w2_ref[...],
                preferred_element_type=jnp.float32)
    c = c + b2_ref[...] * (j == 0).astype(jnp.float32)
    outc_ref[0] = c


def ff_forward(x, w1, b1, w2, b2, *, tb_max=512, tn=256):
    B, F = x.shape
    H = w1.shape[1]
    C = w2.shape[1]
    Cp = pl.cdiv(C, 128) * 128                     # lane-dense classifier width

    tb = B if B <= tb_max else tb_max              # cap batch tile (VMEM / pipelining)
    assert B % tb == 0, "batch must be divisible by the batch tile"
    assert H % tn == 0, "hidden width must be divisible by the H tile"
    nb, nh = B // tb, H // tn

    # bf16 storage for the streamed operands (HBM-bandwidth bound kernel);
    # biases stay f32, W2/b2 are zero-padded to the lane-dense width Cp.
    x_bf = x.astype(jnp.bfloat16)
    w1_bf = w1.astype(jnp.bfloat16)
    w2_bf = jnp.zeros((H, Cp), jnp.bfloat16).at[:, :C].set(w2.astype(jnp.bfloat16))
    b1_f = b1.astype(jnp.float32).reshape(1, H)
    b2_f = jnp.zeros((1, Cp), jnp.float32).at[:, :C].set(
        b2.astype(jnp.float32).reshape(1, C))

    out_shapes = (
        jax.ShapeDtypeStruct((B, H), jnp.float32),        # bottleneck output
        jax.ShapeDtypeStruct((nh, B, Cp), jnp.float32),   # per-H-tile classifier partials
    )

    out, outc_partial = pl.pallas_call(
        ff_kernel,
        out_shape=out_shapes,
        grid_spec=pltpu.PrefetchScalarGridSpec(
            num_scalar_prefetch=0,
            grid=(nb, nh),
            in_specs=[
                pl.BlockSpec((tb, F), lambda i, j: (i, 0)),    # x tile (bf16)
                pl.BlockSpec((F, tn), lambda i, j: (0, j)),    # W1 column tile (bf16)
                pl.BlockSpec((1, tn), lambda i, j: (0, j)),    # b1 tile (f32)
                pl.BlockSpec((tn, Cp), lambda i, j: (j, 0)),   # W2 row tile (bf16)
                pl.BlockSpec((1, Cp), lambda i, j: (0, 0)),    # b2 (f32, resident)
            ],
            out_specs=[
                pl.BlockSpec((tb, tn), lambda i, j: (i, j)),      # out tile
                pl.BlockSpec((1, tb, Cp), lambda i, j: (j, i, 0)),  # outc partial
            ],
        ),
        compiler_params=pltpu.CompilerParams(
            dimension_semantics=("parallel", "parallel"),  # both axes megacore-splittable
        ),
    )(x_bf, w1_bf, b1_f, w2_bf, b2_f)

    # Tiny split-K reduction over H tiles + un-pad to class_num.
    outc = outc_partial.sum(axis=0)[:, :C]
    return out, outc


def xavier_normal(key, shape):
    # shape = (in_features, out_features); matches torch.nn.init.xavier_normal_
    fan_in, fan_out = shape[0], shape[1]
    std = float(np.sqrt(2.0 / (fan_in + fan_out)))
    return jax.random.normal(key, shape, dtype=jnp.float32) * std


if __name__ == "__main__":
    # Small, deterministic setup consistent with FF(num_features=2048).
    B = 8            # batch
    F = 2048         # num_features
    H = 512          # bottleneck width
    C = 16           # class_num (dataset-dependent in the original script)

    key = jax.random.PRNGKey(0)
    kx, kw1, kw2 = jax.random.split(key, 3)

    x = jax.random.normal(kx, (B, F), dtype=jnp.float32)
    # Linear weights: xavier_normal, biases: zeros (as in init_weights)
    w1 = xavier_normal(kw1, (F, H))
    b1 = jnp.zeros((1, H), dtype=jnp.float32)
    w2 = xavier_normal(kw2, (H, C))
    b2 = jnp.zeros((1, C), dtype=jnp.float32)

    out, outc = ff_forward(x, w1, b1, w2, b2)
    jax.block_until_ready((out, outc))
    assert out.shape == (B, H) and outc.shape == (B, C)

    # Reference matching the kernel's numerics (bf16-rounded operands, f32 math).
    hi = jax.lax.Precision.HIGHEST
    xb = x.astype(jnp.bfloat16).astype(jnp.float32)
    w1b = w1.astype(jnp.bfloat16).astype(jnp.float32)
    w2b = w2.astype(jnp.bfloat16).astype(jnp.float32)
    out_ref = jnp.maximum(jnp.dot(xb, w1b, precision=hi) + b1, 0.0)
    hb = out_ref.astype(jnp.bfloat16).astype(jnp.float32)
    outc_ref = jnp.dot(hb, w2b, precision=hi) + b2

    np.testing.assert_allclose(np.asarray(out), np.asarray(out_ref),
                               rtol=2e-3, atol=2e-3)
    np.testing.assert_allclose(np.asarray(outc), np.asarray(outc_ref),
                               rtol=1e-2, atol=1e-2)

    print("KERNEL_OK")
</pallas_src>

<mosaic_0001>
module attributes {stable_mosaic.version = 11 : i64} {
  func.func @ff_kernel(%arg0: i32, %arg1: i32, %arg2: memref<8x2048xbf16, #tpu.memory_space<vmem>>, %arg3: memref<2048x256xbf16, #tpu.memory_space<vmem>>, %arg4: memref<1x256xf32, #tpu.memory_space<vmem>>, %arg5: memref<256x128xbf16, #tpu.memory_space<vmem>>, %arg6: memref<1x128xf32, #tpu.memory_space<vmem>>, %arg7: memref<8x256xf32, #tpu.memory_space<vmem>>, %arg8: memref<1x8x128xf32, #tpu.memory_space<vmem>>) attributes {dimension_semantics = [#tpu.dimension_semantics<parallel>, #tpu.dimension_semantics<parallel>], iteration_bounds = array<i64: 1, 2>, scalar_prefetch = 0 : i64, scratch_operands = 0 : i64, tpu.core_type = #tpu.core_type<tc>, window_params = [{transform_indices = @transform_0, window_bounds = array<i64: 8, 2048>}, {transform_indices = @transform_1, window_bounds = array<i64: 2048, 256>}, {transform_indices = @transform_2, window_bounds = array<i64: 1, 256>}, {transform_indices = @transform_3, window_bounds = array<i64: 256, 128>}, {pipeline_mode = #tpu.pipeline_mode<synchronous>, transform_indices = @transform_4, window_bounds = array<i64: 1, 128>}, {transform_indices = @transform_5, window_bounds = array<i64: 8, 256>}, {transform_indices = @transform_6, window_bounds = array<i64: 1, 8, 128>}]} {
    %c0 = arith.constant 0 : index
    %c0_0 = arith.constant 0 : index
    %0 = vector.load %arg2[%c0, %c0_0] : memref<8x2048xbf16, #tpu.memory_space<vmem>>, vector<8x2048xbf16>
    %c0_1 = arith.constant 0 : index
    %c0_2 = arith.constant 0 : index
    %1 = vector.load %arg3[%c0_1, %c0_2] : memref<2048x256xbf16, #tpu.memory_space<vmem>>, vector<2048x256xbf16>
    %cst = arith.constant dense<0.000000e+00> : vector<8x256xf32>
    %2 = tpu.matmul %0, %1, %cst {dimension_numbers = #tpu.dot_dimension_numbers<[1], [0], [0], [1], [0, 0, 1, 1], [], []>} : vector<8x2048xbf16>, vector<2048x256xbf16>, vector<8x256xf32> -> vector<8x256xf32>
    %c0_3 = arith.constant 0 : index
    %c0_4 = arith.constant 0 : index
    %3 = vector.load %arg4[%c0_3, %c0_4] : memref<1x256xf32, #tpu.memory_space<vmem>>, vector<1x256xf32>
    %4 = vector.broadcast %3 : vector<1x256xf32> to vector<8x256xf32>
    %5 = arith.addf %2, %4 : vector<8x256xf32>
    %cst_5 = arith.constant 0.000000e+00 : f32
    %6 = vector.broadcast %cst_5 : f32 to vector<8x256xf32>
    %7 = arith.maximumf %5, %6 : vector<8x256xf32>
    %c0_6 = arith.constant 0 : index
    %c0_7 = arith.constant 0 : index
    %8 = vector.load %arg7[%c0_6, %c0_7] : memref<8x256xf32, #tpu.memory_space<vmem>>, vector<8x256xf32>
    tpu.vector_store %arg7[%c0_6, %c0_7], %7 {strides = array<i32>} : memref<8x256xf32, #tpu.memory_space<vmem>>, vector<8x256xf32>,
    %9 = arith.truncf %7 : vector<8x256xf32> to vector<8x256xbf16>
    %c0_8 = arith.constant 0 : index
    %c0_9 = arith.constant 0 : index
    %10 = vector.load %arg5[%c0_8, %c0_9] : memref<256x128xbf16, #tpu.memory_space<vmem>>, vector<256x128xbf16>
    %cst_10 = arith.constant dense<0.000000e+00> : vector<8x128xf32>
    %11 = tpu.matmul %9, %10, %cst_10 {dimension_numbers = #tpu.dot_dimension_numbers<[1], [0], [0], [1], [0, 0, 1, 1], [], []>} : vector<8x256xbf16>, vector<256x128xbf16>, vector<8x128xf32> -> vector<8x128xf32>
    %c0_11 = arith.constant 0 : index
    %c0_12 = arith.constant 0 : index
    %12 = vector.load %arg6[%c0_11, %c0_12] : memref<1x128xf32, #tpu.memory_space<vmem>>, vector<1x128xf32>
    %c0_i32 = arith.constant 0 : i32
    %13 = arith.cmpi eq, %arg1, %c0_i32 : i32
    %14 = arith.extui %13 : i1 to i32
    %15 = arith.sitofp %14 : i32 to f32
    %16 = vector.broadcast %15 : f32 to vector<1x128xf32>
    %17 = arith.mulf %12, %16 : vector<1x128xf32>
    %18 = vector.broadcast %17 : vector<1x128xf32> to vector<8x128xf32>
    %19 = arith.addf %11, %18 : vector<8x128xf32>
    %c0_13 = arith.constant 0 : index
    %c0_14 = arith.constant 0 : index
    %c0_15 = arith.constant 0 : index
    %20 = vector.load %arg8[%c0_13, %c0_14, %c0_15] : memref<1x8x128xf32, #tpu.memory_space<vmem>>, vector<1x8x128xf32>
    %21 = vector.shape_cast %20 : vector<1x8x128xf32> to vector<8x128xf32>
    %22 = vector.shape_cast %19 : vector<8x128xf32> to vector<1x8x128xf32>
    tpu.vector_store %arg8[%c0_13, %c0_14, %c0_15], %22 {strides = array<i32>} : memref<1x8x128xf32, #tpu.memory_space<vmem>>, vector<1x8x128xf32>,
    return
  }
  func.func @transform_0(%arg0: i32, %arg1: i32) -> (i32, i32) {
    %c0_i32 = arith.constant 0 : i32
    %c0_i32_0 = arith.constant 0 : i32
    return %arg0, %c0_i32 : i32, i32
  }
  func.func @transform_1(%arg0: i32, %arg1: i32) -> (i32, i32) {
    %c0_i32 = arith.constant 0 : i32
    %c0_i32_0 = arith.constant 0 : i32
    return %c0_i32, %arg1 : i32, i32
  }
  func.func @transform_2(%arg0: i32, %arg1: i32) -> (i32, i32) {
    %c0_i32 = arith.constant 0 : i32
    %c0_i32_0 = arith.constant 0 : i32
    return %c0_i32, %arg1 : i32, i32
  }
  func.func @transform_3(%arg0: i32, %arg1: i32) -> (i32, i32) {
    %c0_i32 = arith.constant 0 : i32
    %c0_i32_0 = arith.constant 0 : i32
    return %arg1, %c0_i32 : i32, i32
  }
  func.func @transform_4(%arg0: i32, %arg1: i32) -> (i32, i32) {
    %c0_i32 = arith.constant 0 : i32
    %c0_i32_0 = arith.constant 0 : i32
    %c0_i32_1 = arith.constant 0 : i32
    return %c0_i32, %c0_i32_0 : i32, i32
  }
  func.func @transform_5(%arg0: i32, %arg1: i32) -> (i32, i32) {
    %c0_i32 = arith.constant 0 : i32
    return %arg0, %arg1 : i32, i32
  }
  func.func @transform_6(%arg0: i32, %arg1: i32) -> (i32, i32, i32) {
    %c0_i32 = arith.constant 0 : i32
    %c0_i32_0 = arith.constant 0 : i32
    return %arg1, %arg0, %c0_i32 : i32, i32, i32
  }
}

</mosaic_0001>

<llo_original>
// kernel: tpu_custom_call.1
$region0: #{tpu_custom_call.1}
  #allocation0 [shape = 'u32[]', space=smem, size = 0x4, offset = 0x4, fixed_abs, tag = 'smem constant byte address 0x4 - core index']
  #allocation1 [shape = 'u32[144,128]{1,0:T(1,128)}', space=vmem, size = 0x12000, scoped, tag = 'internal scratch']
  %s0 = inlined_call_operand.hbm [shape: bf16[8,2048], index: 0, kind: input, shape index: {}]
  %s1 = inlined_call_operand.hbm [shape: bf16[2048,512], index: 1, kind: input, shape index: {}]
  %s2 = inlined_call_operand.hbm [shape: f32[1,512], index: 2, kind: input, shape index: {}]
  %s3 = inlined_call_operand.hbm [shape: bf16[512,128], index: 3, kind: input, shape index: {}]
  %s4 = inlined_call_operand.hbm [shape: f32[1,128], index: 4, kind: input, shape index: {}]
  %s5 = inlined_call_operand.hbm [shape: f32[8,512], index: 5, kind: output, shape index: {0}]
  %s6 = inlined_call_operand.hbm [shape: f32[2,8,128], index: 6, kind: output, shape index: {1}]
  %7 = xla_tuple %s5, %s6
  %s8 = sld [smem:[#allocation0]]
  $region81: #{tpu_custom_call.1} parent=0
    _
  %s10 = ssub.s32 1, %s8
  %s11 = scalar_select 0, %s10, %s8
  $region1: #{tpu_custom_call.1} parent=0
    #allocation2 [shape = 'u8[32768]{0}', space=vmem, size = 0x8000, scoped, tag = 'input window, operand 0, single buffered']
    #allocation3 [shape = 's32[2]{0}', space=sflag, size = 0x8, scoped, tag = 'scoped memory for tpu_custom_call.1']
    #allocation4 [shape = 's32[2]{0}', space=sflag, size = 0x8, scoped, tag = 'scoped memory for tpu_custom_call.1']
    #allocation5 [shape = 'u8[2097152]{0}', space=vmem, size = 0x200000, scoped, tag = 'input window, operand 1']
    #allocation6 [shape = 's32[2]{0}', space=sflag, size = 0x8, scoped, tag = 'scoped memory for tpu_custom_call.1']
    #allocation7 [shape = 'u8[2048]{0}', space=vmem, size = 0x800, scoped, tag = 'input window, operand 2']
    #allocation8 [shape = 'u8[131072]{0}', space=vmem, size = 0x20000, scoped, tag = 'input window, operand 3']
    #allocation9 [shape = 's32[2]{0}', space=sflag, size = 0x8, scoped, tag = 'scoped memory for tpu_custom_call.1']
    #allocation10 [shape = 'u8[512]{0}', space=vmem, size = 0x400, scoped, tag = 'input window, operand 4, single buffered']
    #allocation11 [shape = 'u8[16384]{0}', space=vmem, size = 0x4000, scoped, tag = 'output window, operand 0']
    #allocation12 [shape = 'u8[8192]{0}', space=vmem, size = 0x2000, scoped, tag = 'output window, operand 1']
    #allocation13 [shape = 's32[2]{0}', space=sflag, size = 0x8, scoped, tag = 'scoped memory for tpu_custom_call.1']
    %12 = vsyncpa [#allocation3], 0
    %13 = vsyncpa [#allocation6], 0
    %s14 = scalar_lea.sflag [#allocation6], 1
    %15 = vsyncpa %s14, 0
    %16 = vsyncpa [#allocation9], 0
    %s17 = scalar_lea.sflag [#allocation9], 1
    %18 = vsyncpa %s17, 0
    %19 = vsyncpa [#allocation4], 0
    %s20 = scalar_lea.sflag [#allocation4], 1
    %21 = vsyncpa %s20, 0
    %22 = vsyncpa [#allocation13], 0
    %s23 = scalar_lea.sflag [#allocation13], 1
    %24 = vsyncpa %s23, 0
    loop: start=0, step=1, limit=4
    $region2: #{tpu_custom_call.1} parent=1 // loop_pre_header
      _
    $region3: #{tpu_custom_call.1} parent=1 // loop_header
      %s26 = sphi 0, %s30
      %p27 = scmp.ge.s32.totalorder %s26, 4
      %s33 = sphi 0, %s45
      %s34 = sphi 0, %s41
      %s35 = sphi 0, %s33
      %s36 = sphi 0, %s34
      %s37 = sphi 0, %s35
      %s38 = sphi 0, %s36
      %s48 = sphi 0, %s50
      %s51 = sphi 0, %s48
      %s52 = sphi 0, %s51
      %s68 = sphi 0, %s52
      %s74 = sphi 0, %s76
      %s77 = sphi 0, %s74
      %s78 = sphi 0, %s77
      %s94 = sphi 0, %s78
      %s100 = sphi 0, %s102
      %s103 = sphi 0, %s100
      %s104 = sphi 0, %s103
      %s120 = sphi 0, %s104
      %s126 = sphi 0, %s128
      %s129 = sphi 0, %s126
      %s130 = sphi 0, %s129
      %s146 = sphi 0, %s130
      %s150 = sphi 0, %s150
      %s152 = sphi 0, %s150
      %s153 = sphi 0, %s152
      %s167 = sphi 0, %s153
      %s175 = sphi 0, %s177
      %s178 = sphi 0, %s175
      %s179 = sphi 0, %s178
      %s195 = sphi 0, %s179
      %s203 = sphi 0, %s205
      %s206 = sphi 0, %s203
      %s207 = sphi 0, %s206
      %s223 = sphi 0, %s207
    $region4: #{tpu_custom_call.1} parent=1 // loop_header_branch
      %29 = sbr.rel (%p27) target = $region8
    $region5: #{tpu_custom_call.1} parent=1 // loop_body
      %s31 = ssub.s32 %s26, 1
      %s32 = ssub.s32 %s26, 2
      %s39 = sadd.s32 1, %s34
      %p40 = scmp.ge.s32.totalorder %s39, 2
      %s41 = scalar_select %p40, 0, %s39
      %s42 = sadd.s32 1, %s33
      %s43 = scalar_select %p40, %s42, %s33
      %p44 = scmp.ge.s32.totalorder %s43, 1
      %s45 = scalar_select %p44, 0, %s43
      %s46 = ssub.s32 %s33, %s45
      %p47 = scmp.eq.s32.totalorder %s46, 0
      %s49 = sadd.s32 %s48, 1
      %s50 = scalar_select %p47, %s48, %s49
      %p53 = pneg %p47
      %p54 = scmp.eq.s32.totalorder %s26, 1
      %p55 = por %p53, %p54
      %p56 = scmp.ne.s32.totalorder %s48, %s51
      %p57 = scmp.eq.s32.totalorder %s26, 0
      %p58 = por %p56, %p57
      %p59 = scmp.ne.s32.totalorder %s48, %s51
      %p60 = scmp.eq.s32.totalorder %s31, 1
      %p61 = por %p59, %p60
      %p62 = scmp.ne.s32.totalorder %s51, %s52
      %p63 = scmp.eq.s32.totalorder %s31, 0
      %p64 = por %p62, %p63
      %p65 = scmp.ne.s32.totalorder %s51, %s52
      %p66 = scmp.eq.s32.totalorder %s32, 1
      %p67 = por %p65, %p66
      %p69 = scmp.ne.s32.totalorder %s52, %s68
      %p70 = scmp.eq.s32.totalorder %s32, 0
      %p71 = por %p69, %p70
      %s72 = ssub.s32 %s34, %s41
      %p73 = scmp.eq.s32.totalorder %s72, 0
      %s75 = sadd.s32 %s74, 1
      %s76 = scalar_select %p73, %s74, %s75
      %p79 = pneg %p73
      %p80 = scmp.eq.s32.totalorder %s26, 1
      %p81 = por %p79, %p80
      %p82 = scmp.ne.s32.totalorder %s74, %s77
      %p83 = scmp.eq.s32.totalorder %s26, 0
      %p84 = por %p82, %p83
      %p85 = scmp.ne.s32.totalorder %s74, %s77
      %p86 = scmp.eq.s32.totalorder %s31, 1
      %p87 = por %p85, %p86
      %p88 = scmp.ne.s32.totalorder %s77, %s78
      %p89 = scmp.eq.s32.totalorder %s31, 0
      %p90 = por %p88, %p89
      %p91 = scmp.ne.s32.totalorder %s77, %s78
      %p92 = scmp.eq.s32.totalorder %s32, 1
      %p93 = por %p91, %p92
      %p95 = scmp.ne.s32.totalorder %s78, %s94
      %p96 = scmp.eq.s32.totalorder %s32, 0
      %p97 = por %p95, %p96
      %s98 = ssub.s32 %s34, %s41
      %p99 = scmp.eq.s32.totalorder %s98, 0
      %s101 = sadd.s32 %s100, 1
      %s102 = scalar_select %p99, %s100, %s101
      %p105 = pneg %p99
      %p106 = scmp.eq.s32.totalorder %s26, 1
      %p107 = por %p105, %p106
      %p108 = scmp.ne.s32.totalorder %s100, %s103
      %p109 = scmp.eq.s32.totalorder %s26, 0
      %p110 = por %p108, %p109
      %p111 = scmp.ne.s32.totalorder %s100, %s103
      %p112 = scmp.eq.s32.totalorder %s31, 1
      %p113 = por %p111, %p112
      %p114 = scmp.ne.s32.totalorder %s103, %s104
      %p115 = scmp.eq.s32.totalorder %s31, 0
      %p116 = por %p114, %p115
      %p117 = scmp.ne.s32.totalorder %s103, %s104
      %p118 = scmp.eq.s32.totalorder %s32, 1
      %p119 = por %p117, %p118
      %p121 = scmp.ne.s32.totalorder %s104, %s120
      %p122 = scmp.eq.s32.totalorder %s32, 0
      %p123 = por %p121, %p122
      %s124 = ssub.s32 %s34, %s41
      %p125 = scmp.eq.s32.totalorder %s124, 0
      %s127 = sadd.s32 %s126, 1
      %s128 = scalar_select %p125, %s126, %s127
      %p131 = pneg %p125
      %p132 = scmp.eq.s32.totalorder %s26, 1
      %p133 = por %p131, %p132
      %p134 = scmp.ne.s32.totalorder %s126, %s129
      %p135 = scmp.eq.s32.totalorder %s26, 0
      %p136 = por %p134, %p135
      %p137 = scmp.ne.s32.totalorder %s126, %s129
      %p138 = scmp.eq.s32.totalorder %s31, 1
      %p139 = por %p137, %p138
      %p140 = scmp.ne.s32.totalorder %s129, %s130
      %p141 = scmp.eq.s32.totalorder %s31, 0
      %p142 = por %p140, %p141
      %p143 = scmp.ne.s32.totalorder %s129, %s130
      %p144 = scmp.eq.s32.totalorder %s32, 1
      %p145 = por %p143, %p144
      %p147 = scmp.ne.s32.totalorder %s130, %s146
      %p148 = scmp.eq.s32.totalorder %s32, 0
      %p149 = por %p147, %p148
      %s151 = sadd.s32 %s150, 1
      %p154 = scmp.eq.s32.totalorder %s26, 1
      %p155 = scmp.ne.s32.totalorder %s150, %s152
      %p156 = scmp.eq.s32.totalorder %s26, 0
      %p157 = por %p155, %p156
      %p158 = scmp.ne.s32.totalorder %s150, %s152
      %p159 = scmp.eq.s32.totalorder %s31, 1
      %p160 = por %p158, %p159
      %p161 = scmp.ne.s32.totalorder %s152, %s153
      %p162 = scmp.eq.s32.totalorder %s31, 0
      %p163 = por %p161, %p162
      %p164 = scmp.ne.s32.totalorder %s152, %s153
      %p165 = scmp.eq.s32.totalorder %s32, 1
      %p166 = por %p164, %p165
      %p168 = scmp.ne.s32.totalorder %s153, %s167
      %p169 = scmp.eq.s32.totalorder %s32, 0
      %p170 = por %p168, %p169
      %s171 = ssub.s32 %s33, %s45
      %s172 = ssub.s32 %s34, %s41
      %s173 = sor.u32 %s171, %s172
      %p174 = scmp.eq.s32.totalorder %s173, 0
      %s176 = sadd.s32 %s175, 1
      %s177 = scalar_select %p174, %s175, %s176
      %p180 = pneg %p174
      %p181 = scmp.eq.s32.totalorder %s26, 1
      %p182 = por %p180, %p181
      %p183 = scmp.ne.s32.totalorder %s175, %s178
      %p184 = scmp.eq.s32.totalorder %s26, 0
      %p185 = por %p183, %p184
      %p186 = scmp.ne.s32.totalorder %s175, %s178
      %p187 = scmp.eq.s32.totalorder %s31, 1
      %p188 = por %p186, %p187
      %p189 = scmp.ne.s32.totalorder %s178, %s179
      %p190 = scmp.eq.s32.totalorder %s31, 0
      %p191 = por %p189, %p190
      %p192 = scmp.ne.s32.totalorder %s178, %s179
      %p193 = scmp.eq.s32.totalorder %s32, 1
      %p194 = por %p192, %p193
      %p196 = scmp.ne.s32.totalorder %s179, %s195
      %p197 = scmp.eq.s32.totalorder %s32, 0
      %p198 = por %p196, %p197
      %s199 = ssub.s32 %s34, %s41
      %s200 = ssub.s32 %s33, %s45
      %s201 = sor.u32 %s199, %s200
      %p202 = scmp.eq.s32.totalorder %s201, 0
      %s204 = sadd.s32 %s203, 1
      %s205 = scalar_select %p202, %s203, %s204
      %p208 = pneg %p202
      %p209 = scmp.eq.s32.totalorder %s26, 1
      %p210 = por %p208, %p209
      %p211 = scmp.ne.s32.totalorder %s203, %s206
      %p212 = scmp.eq.s32.totalorder %s26, 0
      %p213 = por %p211, %p212
      %p214 = scmp.ne.s32.totalorder %s203, %s206
      %p215 = scmp.eq.s32.totalorder %s31, 1
      %p216 = por %p214, %p215
      %p217 = scmp.ne.s32.totalorder %s206, %s207
      %p218 = scmp.eq.s32.totalorder %s31, 0
      %p219 = por %p217, %p218
      %p220 = scmp.ne.s32.totalorder %s206, %s207
      %p221 = scmp.eq.s32.totalorder %s32, 1
      %p222 = por %p220, %p221
      %p224 = scmp.ne.s32.totalorder %s207, %s223
      %p225 = scmp.eq.s32.totalorder %s32, 0
      %p226 = por %p224, %p225
      %p227 = scmp.le.s32.totalorder 1, %s26
      %p228 = scmp.lt.s32.totalorder %s26, 3
      %p229 = pnand %p227, %p228
      %p230 = pneg %p229
      // Predicated region
      $region9: #{tpu_custom_call.1} parent=5 // pred_check
        _
      $region10: #{tpu_custom_call.1} parent=5 // pred_check_branch
        %232 = sbr.rel (%p229) target = $region12
      $region11: #{tpu_custom_call.1} parent=5 // pred_region
        %s233 = ssub.s32 %s26, 1
        // Predicated region
        $region13: #{tpu_custom_call.1} parent=11 // pred_check
          %p234 = pneg %p64
        $region14: #{tpu_custom_call.1} parent=11 // pred_check_branch
          %236 = sbr.rel (%p234) target = $region16
        $region15: #{tpu_custom_call.1} parent=11 // pred_region
          %s238 = ssub.s32 1024, 1024
          %239 = vsyncadd [#allocation3], %s238
          %s240 = smul.addr %s35, 16
          %s241 = smul.addr %s240, 64
          %s242 = scalar_lea.hbm %s0, %s241
          %s244 = sshll.u32 [#allocation2], 4
          %s245 = int_to_ptr.vmem [resolvable:$true] %s244
          %247 = dma.hbm_to_vmem [thread:$0]  %s242, 1024, %s245, [#allocation3]
        $region16: #{tpu_custom_call.1} parent=11 // pred_fallthru
          _
        // Predicated region
        $region17: #{tpu_custom_call.1} parent=11 // pred_check
          %p248 = pneg %p163
        $region18: #{tpu_custom_call.1} parent=11 // pred_check_branch
          %250 = sbr.rel (%p248) target = $region20
        $region19: #{tpu_custom_call.1} parent=11 // pred_region
          %s252 = ssub.s32 16, 16
          %253 = vsyncadd [#allocation9], %s252
          %s255 = sshll.u32 [#allocation10], 4
          %s256 = int_to_ptr.vmem [resolvable:$true] %s255
          %258 = dma.hbm_to_vmem [thread:$0]  %s4, 16, %s256, [#allocation9]
        $region20: #{tpu_custom_call.1} parent=11 // pred_fallthru
          _
      $region12: #{tpu_custom_call.1} parent=5 // pred_fallthru
        _
      %p259 = scmp.lt.s32.totalorder %s26, 2
      // Predicated region
      $region21: #{tpu_custom_call.1} parent=5 // pred_check
        %p260 = pneg %p259
      $region22: #{tpu_custom_call.1} parent=5 // pred_check_branch
        %262 = sbr.rel (%p260) target = $region24
      $region23: #{tpu_custom_call.1} parent=5 // pred_region
        // Predicated region
        $region25: #{tpu_custom_call.1} parent=23 // pred_check
          %p263 = pneg %p84
        $region26: #{tpu_custom_call.1} parent=23 // pred_check_branch
          %265 = sbr.rel (%p263) target = $region28
        $region27: #{tpu_custom_call.1} parent=23 // pred_region
          %s266 = sand.u32 %s26, 1
          %s267 = scalar_lea.sflag [#allocation6], %s266
          %s268 = sand.u32 %s74, 1
          %s269 = smul.addr %s268, 2048
          %s270 = scalar_lea.vmem [#allocation5], %s269
          %s271 = smul.u32 2, %s34
          %s273 = ssub.s32 32768, 32768
          %274 = vsyncadd %s267, %s273
          %s275 = smul.addr %s271, 64
          %s276 = scalar_lea.hbm %s1, %s275
          %s277 = sshll.u32 %s270, 4
          %s278 = int_to_ptr.vmem [resolvable:$true] %s277
          %283 = dma.hbm_to_vmem [thread:$0]  %s276, 32768, %s278, %s267, 256, 128, 8
        $region28: #{tpu_custom_call.1} parent=23 // pred_fallthru
          _
        // Predicated region
        $region29: #{tpu_custom_call.1} parent=23 // pred_check
          %p284 = pneg %p110
        $region30: #{tpu_custom_call.1} parent=23 // pred_check_branch
          %286 = sbr.rel (%p284) target = $region32
        $region31: #{tpu_custom_call.1} parent=23 // pred_region
          %s287 = sand.u32 %s26, 1
          %s288 = scalar_lea.sflag [#allocation6], %s287
          %s289 = sand.u32 %s100, 1
          %s290 = smul.addr %s289, 2
          %s291 = scalar_lea.vmem [#allocation7], %s290
          %s292 = smul.u32 2, %s34
          %s294 = ssub.s32 32, 32
          %295 = vsyncadd %s288, %s294
          %s296 = smul.addr %s292, 16
          %s297 = scalar_lea.hbm %s2, %s296
          %s299 = sshll.u32 %s291, 4
          %s300 = int_to_ptr.vmem [resolvable:$true] %s299
          %302 = dma.hbm_to_vmem [thread:$0]  %s297, 32, %s300, %s288
        $region32: #{tpu_custom_call.1} parent=23 // pred_fallthru
          _
        // Predicated region
        $region33: #{tpu_custom_call.1} parent=23 // pred_check
          %p303 = pneg %p136
        $region34: #{tpu_custom_call.1} parent=23 // pred_check_branch
          %305 = sbr.rel (%p303) target = $region36
        $region35: #{tpu_custom_call.1} parent=23 // pred_region
          %s306 = sand.u32 %s26, 1
          %s307 = scalar_lea.sflag [#allocation9], %s306
          %s308 = sand.u32 %s126, 1
          %s309 = smul.addr %s308, 128
          %s310 = scalar_lea.vmem [#allocation8], %s309
          %s311 = smul.u32 32, %s34
          %s313 = ssub.s32 2048, 2048
          %314 = vsyncadd %s307, %s313
          %s315 = smul.addr %s311, 64
          %s316 = scalar_lea.hbm %s3, %s315
          %s317 = sshll.u32 %s310, 4
          %s318 = int_to_ptr.vmem [resolvable:$true] %s317
          %323 = dma.hbm_to_vmem [thread:$0]  %s316, 2048, %s318, %s307, 64, 64, 4
        $region36: #{tpu_custom_call.1} parent=23 // pred_fallthru
          _
      $region24: #{tpu_custom_call.1} parent=5 // pred_fallthru
        _
      %p324 = scmp.le.s32.totalorder 1, %s26
      %p325 = scmp.lt.s32.totalorder %s26, 3
      %p326 = pnand %p324, %p325
      %p327 = pneg %p326
      // Predicated region
      $region37: #{tpu_custom_call.1} parent=5 // pred_check
        _
      $region38: #{tpu_custom_call.1} parent=5 // pred_check_branch
        %329 = sbr.rel (%p326) target = $region40
      $region39: #{tpu_custom_call.1} parent=5 // pred_region
        %s330 = ssub.s32 %s26, 1
        // Predicated region
        $region41: #{tpu_custom_call.1} parent=39 // pred_check
          %p331 = pneg %p64
        $region42: #{tpu_custom_call.1} parent=39 // pred_check_branch
          %333 = sbr.rel (%p331) target = $region44
        $region43: #{tpu_custom_call.1} parent=39 // pred_region
          %334 = dma.done [#allocation3], 1024
        $region44: #{tpu_custom_call.1} parent=39 // pred_fallthru
          _
        %s335 = sand.u32 %s31, 1
        %s336 = scalar_lea.sflag [#allocation6], %s335
        %s337 = sand.u32 %s77, 1
        %s338 = smul.addr %s337, 2048
        %s339 = scalar_lea.vmem [#allocation5], %s338
        // Predicated region
        $region45: #{tpu_custom_call.1} parent=39 // pred_check
          %p340 = pneg %p90
        $region46: #{tpu_custom_call.1} parent=39 // pred_check_branch
          %342 = sbr.rel (%p340) target = $region48
        $region47: #{tpu_custom_call.1} parent=39 // pred_region
          %343 = dma.done %s336, 32768
        $region48: #{tpu_custom_call.1} parent=39 // pred_fallthru
          _
        %s344 = sand.u32 %s31, 1
        %s345 = scalar_lea.sflag [#allocation6], %s344
        %s346 = sand.u32 %s103, 1
        %s347 = smul.addr %s346, 2
        %s348 = scalar_lea.vmem [#allocation7], %s347
        // Predicated region
        $region49: #{tpu_custom_call.1} parent=39 // pred_check
          %p349 = pneg %p116
        $region50: #{tpu_custom_call.1} parent=39 // pred_check_branch
          %351 = sbr.rel (%p349) target = $region52
        $region51: #{tpu_custom_call.1} parent=39 // pred_region
          %352 = dma.done %s345, 32
        $region52: #{tpu_custom_call.1} parent=39 // pred_fallthru
          _
        %s353 = sand.u32 %s31, 1
        %s354 = scalar_lea.sflag [#allocation9], %s353
        %s355 = sand.u32 %s129, 1
        %s356 = smul.addr %s355, 128
        %s357 = scalar_lea.vmem [#allocation8], %s356
        // Predicated region
        $region53: #{tpu_custom_call.1} parent=39 // pred_check
          %p358 = pneg %p142
        $region54: #{tpu_custom_call.1} parent=39 // pred_check_branch
          %360 = sbr.rel (%p358) target = $region56
        $region55: #{tpu_custom_call.1} parent=39 // pred_region
          %361 = dma.done %s354, 2048
        $region56: #{tpu_custom_call.1} parent=39 // pred_fallthru
          _
        // Predicated region
        $region57: #{tpu_custom_call.1} parent=39 // pred_check
          %p362 = pneg %p163
        $region58: #{tpu_custom_call.1} parent=39 // pred_check_branch
          %364 = sbr.rel (%p362) target = $region60
        $region59: #{tpu_custom_call.1} parent=39 // pred_region
          %365 = dma.done [#allocation9], 16
        $region60: #{tpu_custom_call.1} parent=39 // pred_fallthru
          _
        %p366 = pneg %p64
        %p367 = pneg %p61
        %s368 = sand.u32 %s31, 1
        %s369 = scalar_lea.sflag [#allocation6], %s368
        %s370 = sand.u32 %s77, 1
        %s371 = smul.addr %s370, 2048
        %s372 = scalar_lea.vmem [#allocation5], %s371
        %p373 = pneg %p90
        %p374 = pneg %p87
        %s375 = sand.u32 %s31, 1
        %s376 = scalar_lea.sflag [#allocation6], %s375
        %s377 = sand.u32 %s103, 1
        %s378 = smul.addr %s377, 2
        %s379 = scalar_lea.vmem [#allocation7], %s378
        %p380 = pneg %p116
        %p381 = pneg %p113
        %s382 = sand.u32 %s31, 1
        %s383 = scalar_lea.sflag [#allocation9], %s382
        %s384 = sand.u32 %s129, 1
        %s385 = smul.addr %s384, 128
        %s386 = scalar_lea.vmem [#allocation8], %s385
        %p387 = pneg %p142
        %p388 = pneg %p139
        %p389 = pneg %p163
        %p390 = pneg %p160
        %p391 = pneg %p191
        %p392 = pneg %p188
        %s393 = sand.u32 %s178, 1
        %s394 = scalar_lea.sflag [#allocation4], %s393
        %s395 = sand.u32 %s178, 1
        %s396 = smul.addr %s395, 16
        %s397 = scalar_lea.vmem [#allocation11], %s396
        %p398 = pneg %p219
        %p399 = pneg %p216
        %s400 = sand.u32 %s206, 1
        %s401 = scalar_lea.sflag [#allocation13], %s400
        %s402 = sand.u32 %s206, 1
        %s403 = smul.addr %s402, 8
        %s404 = scalar_lea.vmem [#allocation12], %s403
        %s405 = smul.u32 2, %s36
        %s406 = smul.u32 2, %s36
        %s407 = smul.u32 32, %s36
        %s408 = smul.u32 2, %s36
        %v410 = vld [vmem:[#allocation2] sm:$0xff]
        %v411 = vld [vmem:[#allocation2 + $0x8] sm:$0xff]
        %v412 = vld [vmem:[#allocation2 + $0x10] sm:$0xff]
        %v413 = vld [vmem:[#allocation2 + $0x18] sm:$0xff]
        %v414 = vld [vmem:[#allocation2 + $0x20] sm:$0xff]
        %v415 = vld [vmem:[#allocation2 + $0x28] sm:$0xff]
        %v416 = vld [vmem:[#allocation2 + $0x30] sm:$0xff]
        %v417 = vld [vmem:[#allocation2 + $0x38] sm:$0xff]
        %v418 = vld [vmem:[%s339] sm:$0xff]
        %v419 = vld [vmem:[%s339 + $0x8] sm:$0xff]
        %v420 = vld [vmem:[%s339 + $0x10] sm:$0xff]
        %v421 = vld [vmem:[%s339 + $0x18] sm:$0xff]
        %v422 = vld [vmem:[%s339 + $0x20] sm:$0xff]
        %v423 = vld [vmem:[%s339 + $0x28] sm:$0xff]
        %v424 = vld [vmem:[%s339 + $0x30] sm:$0xff]
        %v425 = vld [vmem:[%s339 + $0x38] sm:$0xff]
        %v426 = vld [vmem:[%s339 + $0x40] sm:$0xff]
        %v427 = vld [vmem:[%s339 + $0x48] sm:$0xff]
        %v428 = vld [vmem:[%s339 + $0x50] sm:$0xff]
        %v429 = vld [vmem:[%s339 + $0x58] sm:$0xff]
        %v430 = vld [vmem:[%s339 + $0x60] sm:$0xff]
        %v431 = vld [vmem:[%s339 + $0x68] sm:$0xff]
        %v432 = vld [vmem:[%s339 + $0x70] sm:$0xff]
        %v433 = vld [vmem:[%s339 + $0x78] sm:$0xff]
        %v434 = vld [vmem:[%s339 + $0x80] sm:$0xff]
        %v435 = vld [vmem:[%s339 + $0x88] sm:$0xff]
        %v436 = vld [vmem:[%s339 + $0x90] sm:$0xff]
        %v437 = vld [vmem:[%s339 + $0x98] sm:$0xff]
        %v438 = vld [vmem:[%s339 + $0xa0] sm:$0xff]
        %v439 = vld [vmem:[%s339 + $0xa8] sm:$0xff]
        %v440 = vld [vmem:[%s339 + $0xb0] sm:$0xff]
        %v441 = vld [vmem:[%s339 + $0xb8] sm:$0xff]
        %v442 = vld [vmem:[%s339 + $0xc0] sm:$0xff]
        %v443 = vld [vmem:[%s339 + $0xc8] sm:$0xff]
        %v444 = vld [vmem:[%s339 + $0xd0] sm:$0xff]
        %v445 = vld [vmem:[%s339 + $0xd8] sm:$0xff]
        %v446 = vld [vmem:[%s339 + $0xe0] sm:$0xff]
        %v447 = vld [vmem:[%s339 + $0xe8] sm:$0xff]
        %v448 = vld [vmem:[%s339 + $0xf0] sm:$0xff]
        %v449 = vld [vmem:[%s339 + $0xf8] sm:$0xff]
        %v450 = vld [vmem:[%s339 + $0x100] sm:$0xff]
        %v451 = vld [vmem:[%s339 + $0x108] sm:$0xff]
        %v452 = vld [vmem:[%s339 + $0x110] sm:$0xff]
        %v453 = vld [vmem:[%s339 + $0x118] sm:$0xff]
        %v454 = vld [vmem:[%s339 + $0x120] sm:$0xff]
        %v455 = vld [vmem:[%s339 + $0x128] sm:$0xff]
        %v456 = vld [vmem:[%s339 + $0x130] sm:$0xff]
        %v457 = vld [vmem:[%s339 + $0x138] sm:$0xff]
        %v458 = vld [vmem:[%s339 + $0x140] sm:$0xff]
        %v459 = vld [vmem:[%s339 + $0x148] sm:$0xff]
        %v460 = vld [vmem:[%s339 + $0x150] sm:$0xff]
        %v461 = vld [vmem:[%s339 + $0x158] sm:$0xff]
        %v462 = vld [vmem:[%s339 + $0x160] sm:$0xff]
        %v463 = vld [vmem:[%s339 + $0x168] sm:$0xff]
        %v464 = vld [vmem:[%s339 + $0x170] sm:$0xff]
        %v465 = vld [vmem:[%s339 + $0x178] sm:$0xff]
        %v466 = vld [vmem:[%s339 + $0x180] sm:$0xff]
        %v467 = vld [vmem:[%s339 + $0x188] sm:$0xff]
        %v468 = vld [vmem:[%s339 + $0x190] sm:$0xff]
        %v469 = vld [vmem:[%s339 + $0x198] sm:$0xff]
        %v470 = vld [vmem:[%s339 + $0x1a0] sm:$0xff]
        %v471 = vld [vmem:[%s339 + $0x1a8] sm:$0xff]
        %v472 = vld [vmem:[%s339 + $0x1b0] sm:$0xff]
        %v473 = vld [vmem:[%s339 + $0x1b8] sm:$0xff]
        %v474 = vld [vmem:[%s339 + $0x1c0] sm:$0xff]
        %v475 = vld [vmem:[%s339 + $0x1c8] sm:$0xff]
        %v476 = vld [vmem:[%s339 + $0x1d0] sm:$0xff]
        %v477 = vld [vmem:[%s339 + $0x1d8] sm:$0xff]
        %v478 = vld [vmem:[%s339 + $0x1e0] sm:$0xff]
        %v479 = vld [vmem:[%s339 + $0x1e8] sm:$0xff]
        %v480 = vld [vmem:[%s339 + $0x1f0] sm:$0xff]
        %v481 = vld [vmem:[%s339 + $0x1f8] sm:$0xff]
        %v482 = vld [vmem:[%s339 + $0x200] sm:$0xff]
        %v483 = vld [vmem:[%s339 + $0x208] sm:$0xff]
        %v484 = vld [vmem:[%s339 + $0x210] sm:$0xff]
        %v485 = vld [vmem:[%s339 + $0x218] sm:$0xff]
        %v486 = vld [vmem:[%s339 + $0x220] sm:$0xff]
        %v487 = vld [vmem:[%s339 + $0x228] sm:$0xff]
        %v488 = vld [vmem:[%s339 + $0x230] sm:$0xff]
        %v489 = vld [vmem:[%s339 + $0x238] sm:$0xff]
        %v490 = vld [vmem:[%s339 + $0x240] sm:$0xff]
        %v491 = vld [vmem:[%s339 + $0x248] sm:$0xff]
        %v492 = vld [vmem:[%s339 + $0x250] sm:$0xff]
        %v493 = vld [vmem:[%s339 + $0x258] sm:$0xff]
        %v494 = vld [vmem:[%s339 + $0x260] sm:$0xff]
        %v495 = vld [vmem:[%s339 + $0x268] sm:$0xff]
        %v496 = vld [vmem:[%s339 + $0x270] sm:$0xff]
        %v497 = vld [vmem:[%s339 + $0x278] sm:$0xff]
        %v498 = vld [vmem:[%s339 + $0x280] sm:$0xff]
        %v499 = vld [vmem:[%s339 + $0x288] sm:$0xff]
        %v500 = vld [vmem:[%s339 + $0x290] sm:$0xff]
        %v501 = vld [vmem:[%s339 + $0x298] sm:$0xff]
        %v502 = vld [vmem:[%s339 + $0x2a0] sm:$0xff]
        %v503 = vld [vmem:[%s339 + $0x2a8] sm:$0xff]
        %v504 = vld [vmem:[%s339 + $0x2b0] sm:$0xff]
        %v505 = vld [vmem:[%s339 + $0x2b8] sm:$0xff]
        %v506 = vld [vmem:[%s339 + $0x2c0] sm:$0xff]
        %v507 = vld [vmem:[%s339 + $0x2c8] sm:$0xff]
        %v508 = vld [vmem:[%s339 + $0x2d0] sm:$0xff]
        %v509 = vld [vmem:[%s339 + $0x2d8] sm:$0xff]
        %v510 = vld [vmem:[%s339 + $0x2e0] sm:$0xff]
        %v511 = vld [vmem:[%s339 + $0x2e8] sm:$0xff]
        %v512 = vld [vmem:[%s339 + $0x2f0] sm:$0xff]
        %v513 = vld [vmem:[%s339 + $0x2f8] sm:$0xff]
        %v514 = vld [vmem:[%s339 + $0x300] sm:$0xff]
        %v515 = vld [vmem:[%s339 + $0x308] sm:$0xff]
        %v516 = vld [vmem:[%s339 + $0x310] sm:$0xff]
        %v517 = vld [vmem:[%s339 + $0x318] sm:$0xff]
        %v518 = vld [vmem:[%s339 + $0x320] sm:$0xff]
        %v519 = vld [vmem:[%s339 + $0x328] sm:$0xff]
        %v520 = vld [vmem:[%s339 + $0x330] sm:$0xff]
        %v521 = vld [vmem:[%s339 + $0x338] sm:$0xff]
        %v522 = vld [vmem:[%s339 + $0x340] sm:$0xff]
        %v523 = vld [vmem:[%s339 + $0x348] sm:$0xff]
        %v524 = vld [vmem:[%s339 + $0x350] sm:$0xff]
        %v525 = vld [vmem:[%s339 + $0x358] sm:$0xff]
        %v526 = vld [vmem:[%s339 + $0x360] sm:$0xff]
        %v527 = vld [vmem:[%s339 + $0x368] sm:$0xff]
        %v528 = vld [vmem:[%s339 + $0x370] sm:$0xff]
        %v529 = vld [vmem:[%s339 + $0x378] sm:$0xff]
        %v530 = vld [vmem:[%s339 + $0x380] sm:$0xff]
        %v531 = vld [vmem:[%s339 + $0x388] sm:$0xff]
        %v532 = vld [vmem:[%s339 + $0x390] sm:$0xff]
        %v533 = vld [vmem:[%s339 + $0x398] sm:$0xff]
        %v534 = vld [vmem:[%s339 + $0x3a0] sm:$0xff]
        %v535 = vld [vmem:[%s339 + $0x3a8] sm:$0xff]
        %v536 = vld [vmem:[%s339 + $0x3b0] sm:$0xff]
        %v537 = vld [vmem:[%s339 + $0x3b8] sm:$0xff]
        %v538 = vld [vmem:[%s339 + $0x3c0] sm:$0xff]
        %v539 = vld [vmem:[%s339 + $0x3c8] sm:$0xff]
        %v540 = vld [vmem:[%s339 + $0x3d0] sm:$0xff]
        %v541 = vld [vmem:[%s339 + $0x3d8] sm:$0xff]
        %v542 = vld [vmem:[%s339 + $0x3e0] sm:$0xff]
        %v543 = vld [vmem:[%s339 + $0x3e8] sm:$0xff]
        %v544 = vld [vmem:[%s339 + $0x3f0] sm:$0xff]
        %v545 = vld [vmem:[%s339 + $0x3f8] sm:$0xff]
        %v546 = vld [vmem:[%s339 + $0x400] sm:$0xff]
        %v547 = vld [vmem:[%s339 + $0x408] sm:$0xff]
        %v548 = vld [vmem:[%s339 + $0x410] sm:$0xff]
        %v549 = vld [vmem:[%s339 + $0x418] sm:$0xff]
        %v550 = vld [vmem:[%s339 + $0x420] sm:$0xff]
        %v551 = vld [vmem:[%s339 + $0x428] sm:$0xff]
        %v552 = vld [vmem:[%s339 + $0x430] sm:$0xff]
        %v553 = vld [vmem:[%s339 + $0x438] sm:$0xff]
        %v554 = vld [vmem:[%s339 + $0x440] sm:$0xff]
        %v555 = vld [vmem:[%s339 + $0x448] sm:$0xff]
        %v556 = vld [vmem:[%s339 + $0x450] sm:$0xff]
        %v557 = vld [vmem:[%s339 + $0x458] sm:$0xff]
        %v558 = vld [vmem:[%s339 + $0x460] sm:$0xff]
        %v559 = vld [vmem:[%s339 + $0x468] sm:$0xff]
        %v560 = vld [vmem:[%s339 + $0x470] sm:$0xff]
        %v561 = vld [vmem:[%s339 + $0x478] sm:$0xff]
        %v562 = vld [vmem:[%s339 + $0x480] sm:$0xff]
        %v563 = vld [vmem:[%s339 + $0x488] sm:$0xff]
        %v564 = vld [vmem:[%s339 + $0x490] sm:$0xff]
        %v565 = vld [vmem:[%s339 + $0x498] sm:$0xff]
        %v566 = vld [vmem:[%s339 + $0x4a0] sm:$0xff]
        %v567 = vld [vmem:[%s339 + $0x4a8] sm:$0xff]
        %v568 = vld [vmem:[%s339 + $0x4b0] sm:$0xff]
        %v569 = vld [vmem:[%s339 + $0x4b8] sm:$0xff]
        %v570 = vld [vmem:[%s339 + $0x4c0] sm:$0xff]
        %v571 = vld [vmem:[%s339 + $0x4c8] sm:$0xff]
        %v572 = vld [vmem:[%s339 + $0x4d0] sm:$0xff]
        %v573 = vld [vmem:[%s339 + $0x4d8] sm:$0xff]
        %v574 = vld [vmem:[%s339 + $0x4e0] sm:$0xff]
        %v575 = vld [vmem:[%s339 + $0x4e8] sm:$0xff]
        %v576 = vld [vmem:[%s339 + $0x4f0] sm:$0xff]
        %v577 = vld [vmem:[%s339 + $0x4f8] sm:$0xff]
        %v578 = vld [vmem:[%s339 + $0x500] sm:$0xff]
        %v579 = vld [vmem:[%s339 + $0x508] sm:$0xff]
        %v580 = vld [vmem:[%s339 + $0x510] sm:$0xff]
        %v581 = vld [vmem:[%s339 + $0x518] sm:$0xff]
        %v582 = vld [vmem:[%s339 + $0x520] sm:$0xff]
        %v583 = vld [vmem:[%s339 + $0x528] sm:$0xff]
        %v584 = vld [vmem:[%s339 + $0x530] sm:$0xff]
        %v585 = vld [vmem:[%s339 + $0x538] sm:$0xff]
        %v586 = vld [vmem:[%s339 + $0x540] sm:$0xff]
        %v587 = vld [vmem:[%s339 + $0x548] sm:$0xff]
        %v588 = vld [vmem:[%s339 + $0x550] sm:$0xff]
        %v589 = vld [vmem:[%s339 + $0x558] sm:$0xff]
        %v590 = vld [vmem:[%s339 + $0x560] sm:$0xff]
        %v591 = vld [vmem:[%s339 + $0x568] sm:$0xff]
        %v592 = vld [vmem:[%s339 + $0x570] sm:$0xff]
        %v593 = vld [vmem:[%s339 + $0x578] sm:$0xff]
        %v594 = vld [vmem:[%s339 + $0x580] sm:$0xff]
        %v595 = vld [vmem:[%s339 + $0x588] sm:$0xff]
        %v596 = vld [vmem:[%s339 + $0x590] sm:$0xff]
        %v597 = vld [vmem:[%s339 + $0x598] sm:$0xff]
        %v598 = vld [vmem:[%s339 + $0x5a0] sm:$0xff]
        %v599 = vld [vmem:[%s339 + $0x5a8] sm:$0xff]
        %v600 = vld [vmem:[%s339 + $0x5b0] sm:$0xff]
        %v601 = vld [vmem:[%s339 + $0x5b8] sm:$0xff]
        %v602 = vld [vmem:[%s339 + $0x5c0] sm:$0xff]
        %v603 = vld [vmem:[%s339 + $0x5c8] sm:$0xff]
        %v604 = vld [vmem:[%s339 + $0x5d0] sm:$0xff]
        %v605 = vld [vmem:[%s339 + $0x5d8] sm:$0xff]
        %v606 = vld [vmem:[%s339 + $0x5e0] sm:$0xff]
        %v607 = vld [vmem:[%s339 + $0x5e8] sm:$0xff]
        %v608 = vld [vmem:[%s339 + $0x5f0] sm:$0xff]
        %v609 = vld [vmem:[%s339 + $0x5f8] sm:$0xff]
        %v610 = vld [vmem:[%s339 + $0x600] sm:$0xff]
        %v611 = vld [vmem:[%s339 + $0x608] sm:$0xff]
        %v612 = vld [vmem:[%s339 + $0x610] sm:$0xff]
        %v613 = vld [vmem:[%s339 + $0x618] sm:$0xff]
        %v614 = vld [vmem:[%s339 + $0x620] sm:$0xff]
        %v615 = vld [vmem:[%s339 + $0x628] sm:$0xff]
        %v616 = vld [vmem:[%s339 + $0x630] sm:$0xff]
        %v617 = vld [vmem:[%s339 + $0x638] sm:$0xff]
        %v618 = vld [vmem:[%s339 + $0x640] sm:$0xff]
        %v619 = vld [vmem:[%s339 + $0x648] sm:$0xff]
        %v620 = vld [vmem:[%s339 + $0x650] sm:$0xff]
        %v621 = vld [vmem:[%s339 + $0x658] sm:$0xff]
        %v622 = vld [vmem:[%s339 + $0x660] sm:$0xff]
        %v623 = vld [vmem:[%s339 + $0x668] sm:$0xff]
        %v624 = vld [vmem:[%s339 + $0x670] sm:$0xff]
        %v625 = vld [vmem:[%s339 + $0x678] sm:$0xff]
        %v626 = vld [vmem:[%s339 + $0x680] sm:$0xff]
        %v627 = vld [vmem:[%s339 + $0x688] sm:$0xff]
        %v628 = vld [vmem:[%s339 + $0x690] sm:$0xff]
        %v629 = vld [vmem:[%s339 + $0x698] sm:$0xff]
        %v630 = vld [vmem:[%s339 + $0x6a0] sm:$0xff]
        %v631 = vld [vmem:[%s339 + $0x6a8] sm:$0xff]
        %v632 = vld [vmem:[%s339 + $0x6b0] sm:$0xff]
        %v633 = vld [vmem:[%s339 + $0x6b8] sm:$0xff]
        %v634 = vld [vmem:[%s339 + $0x6c0] sm:$0xff]
        %v635 = vld [vmem:[%s339 + $0x6c8] sm:$0xff]
        %v636 = vld [vmem:[%s339 + $0x6d0] sm:$0xff]
        %v637 = vld [vmem:[%s339 + $0x6d8] sm:$0xff]
        %v638 = vld [vmem:[%s339 + $0x6e0] sm:$0xff]
        %v639 = vld [vmem:[%s339 + $0x6e8] sm:$0xff]
        %v640 = vld [vmem:[%s339 + $0x6f0] sm:$0xff]
        %v641 = vld [vmem:[%s339 + $0x6f8] sm:$0xff]
        %v642 = vld [vmem:[%s339 + $0x700] sm:$0xff]
        %v643 = vld [vmem:[%s339 + $0x708] sm:$0xff]
        %v644 = vld [vmem:[%s339 + $0x710] sm:$0xff]
        %v645 = vld [vmem:[%s339 + $0x718] sm:$0xff]
        %v646 = vld [vmem:[%s339 + $0x720] sm:$0xff]
        %v647 = vld [vmem:[%s339 + $0x728] sm:$0xff]
        %v648 = vld [vmem:[%s339 + $0x730] sm:$0xff]
        %v649 = vld [vmem:[%s339 + $0x738] sm:$0xff]
        %v650 = vld [vmem:[%s339 + $0x740] sm:$0xff]
        %v651 = vld [vmem:[%s339 + $0x748] sm:$0xff]
        %v652 = vld [vmem:[%s339 + $0x750] sm:$0xff]
        %v653 = vld [vmem:[%s339 + $0x758] sm:$0xff]
        %v654 = vld [vmem:[%s339 + $0x760] sm:$0xff]
        %v655 = vld [vmem:[%s339 + $0x768] sm:$0xff]
        %v656 = vld [vmem:[%s339 + $0x770] sm:$0xff]
        %v657 = vld [vmem:[%s339 + $0x778] sm:$0xff]
        %v658 = vld [vmem:[%s339 + $0x780] sm:$0xff]
        %v659 = vld [vmem:[%s339 + $0x788] sm:$0xff]
        %v660 = vld [vmem:[%s339 + $0x790] sm:$0xff]
        %v661 = vld [vmem:[%s339 + $0x798] sm:$0xff]
        %v662 = vld [vmem:[%s339 + $0x7a0] sm:$0xff]
        %v663 = vld [vmem:[%s339 + $0x7a8] sm:$0xff]
        %v664 = vld [vmem:[%s339 + $0x7b0] sm:$0xff]
        %v665 = vld [vmem:[%s339 + $0x7b8] sm:$0xff]
        %v666 = vld [vmem:[%s339 + $0x7c0] sm:$0xff]
        %v667 = vld [vmem:[%s339 + $0x7c8] sm:$0xff]
        %v668 = vld [vmem:[%s339 + $0x7d0] sm:$0xff]
        %v669 = vld [vmem:[%s339 + $0x7d8] sm:$0xff]
        %v670 = vld [vmem:[%s339 + $0x7e0] sm:$0xff]
        %v671 = vld [vmem:[%s339 + $0x7e8] sm:$0xff]
        %v672 = vld [vmem:[%s339 + $0x7f0] sm:$0xff]
        %v673 = vld [vmem:[%s339 + $0x7f8] sm:$0xff]
        %v674 = vld [vmem:[%s348] sm:$0x3]
        %v676 = vlaneseq
        %v677 = vshrl.u32 %v676, 7
        %v678 = vsub.s32 0, %v677
        %v679 = vrot.slane %v674, %v678
        %v680 = vlaneseq
        %v681 = vshrl.u32 %v680, 7
        %v682 = vsub.s32 1, %v681
        %v683 = vrot.slane %v674, %v682
        %v694 = vunpack.c.l.b16 %v410
        %v695 = vunpack.c.h.b16 %v410
        %v696 = vunpack.c.l.b16 %v411
        %v697 = vunpack.c.h.b16 %v411
        %v698 = vunpack.c.l.b16 %v412
        %v699 = vunpack.c.h.b16 %v412
        %v700 = vunpack.c.l.b16 %v413
        %v701 = vunpack.c.h.b16 %v413
        %v702 = vunpack.c.l.b16 %v414
        %v703 = vunpack.c.h.b16 %v414
        %v704 = vunpack.c.l.b16 %v415
        %v705 = vunpack.c.h.b16 %v415
        %v706 = vunpack.c.l.b16 %v416
        %v707 = vunpack.c.h.b16 %v416
        %v708 = vunpack.c.l.b16 %v417
        %v709 = vunpack.c.h.b16 %v417
        %v710 = vpack.c.b16 %v694, %v694
        %v711 = vpack.c.b16 %v695, %v695
        %v712 = vpack.c.b16 %v696, %v696
        %v713 = vpack.c.b16 %v697, %v697
        %v714 = vpack.c.b16 %v698, %v698
        %v715 = vpack.c.b16 %v699, %v699
        %v716 = vpack.c.b16 %v700, %v700
        %v717 = vpack.c.b16 %v701, %v701
        %v718 = vpack.c.b16 %v702, %v702
        %v719 = vpack.c.b16 %v703, %v703
        %v720 = vpack.c.b16 %v704, %v704
        %v721 = vpack.c.b16 %v705, %v705
        %v722 = vpack.c.b16 %v706, %v706
        %v723 = vpack.c.b16 %v707, %v707
        %v724 = vpack.c.b16 %v708, %v708
        %v725 = vpack.c.b16 %v709, %v709
        %v998 = vunpack.c.l.b16 %v418
        %v999 = vunpack.c.h.b16 %v418
        %v1000 = vunpack.c.l.b16 %v419
        %v1001 = vunpack.c.h.b16 %v419
        %v1002 = vunpack.c.l.b16 %v420
        %v1003 = vunpack.c.h.b16 %v420
        %v1004 = vunpack.c.l.b16 %v421
        %v1005 = vunpack.c.h.b16 %v421
        %v1006 = vunpack.c.l.b16 %v422
        %v1007 = vunpack.c.h.b16 %v422
        %v1008 = vunpack.c.l.b16 %v423
        %v1009 = vunpack.c.h.b16 %v423
        %v1010 = vunpack.c.l.b16 %v424
        %v1011 = vunpack.c.h.b16 %v424
        %v1012 = vunpack.c.l.b16 %v425
        %v1013 = vunpack.c.h.b16 %v425
        %v1014 = vunpack.c.l.b16 %v426
        %v1015 = vunpack.c.h.b16 %v426
        %v1016 = vunpack.c.l.b16 %v427
        %v1017 = vunpack.c.h.b16 %v427
        %v1018 = vunpack.c.l.b16 %v428
        %v1019 = vunpack.c.h.b16 %v428
        %v1020 = vunpack.c.l.b16 %v429
        %v1021 = vunpack.c.h.b16 %v429
        %v1022 = vunpack.c.l.b16 %v430
        %v1023 = vunpack.c.h.b16 %v430
        %v1024 = vunpack.c.l.b16 %v431
        %v1025 = vunpack.c.h.b16 %v431
        %v1026 = vunpack.c.l.b16 %v432
        %v1027 = vunpack.c.h.b16 %v432
        %v1028 = vunpack.c.l.b16 %v433
        %v1029 = vunpack.c.h.b16 %v433
        %v1030 = vunpack.c.l.b16 %v434
        %v1031 = vunpack.c.h.b16 %v434
        %v1032 = vunpack.c.l.b16 %v435
        %v1033 = vunpack.c.h.b16 %v435
        %v1034 = vunpack.c.l.b16 %v436
        %v1035 = vunpack.c.h.b16 %v436
        %v1036 = vunpack.c.l.b16 %v437
        %v1037 = vunpack.c.h.b16 %v437
        %v1038 = vunpack.c.l.b16 %v438
        %v1039 = vunpack.c.h.b16 %v438
        %v1040 = vunpack.c.l.b16 %v439
        %v1041 = vunpack.c.h.b16 %v439
        %v1042 = vunpack.c.l.b16 %v440
        %v1043 = vunpack.c.h.b16 %v440
        %v1044 = vunpack.c.l.b16 %v441
        %v1045 = vunpack.c.h.b16 %v441
        %v1046 = vunpack.c.l.b16 %v442
        %v1047 = vunpack.c.h.b16 %v442
        %v1048 = vunpack.c.l.b16 %v443
        %v1049 = vunpack.c.h.b16 %v443
        %v1050 = vunpack.c.l.b16 %v444
        %v1051 = vunpack.c.h.b16 %v444
        %v1052 = vunpack.c.l.b16 %v445
        %v1053 = vunpack.c.h.b16 %v445
        %v1054 = vunpack.c.l.b16 %v446
        %v1055 = vunpack.c.h.b16 %v446
        %v1056 = vunpack.c.l.b16 %v447
        %v1057 = vunpack.c.h.b16 %v447
        %v1058 = vunpack.c.l.b16 %v448
        %v1059 = vunpack.c.h.b16 %v448
        %v1060 = vunpack.c.l.b16 %v449
        %v1061 = vunpack.c.h.b16 %v449
        %v1062 = vunpack.c.l.b16 %v450
        %v1063 = vunpack.c.h.b16 %v450
        %v1064 = vunpack.c.l.b16 %v451
        %v1065 = vunpack.c.h.b16 %v451
        %v1066 = vunpack.c.l.b16 %v452
        %v1067 = vunpack.c.h.b16 %v452
        %v1068 = vunpack.c.l.b16 %v453
        %v1069 = vunpack.c.h.b16 %v453
        %v1070 = vunpack.c.l.b16 %v454
        %v1071 = vunpack.c.h.b16 %v454
        %v1072 = vunpack.c.l.b16 %v455
        %v1073 = vunpack.c.h.b16 %v455
        %v1074 = vunpack.c.l.b16 %v456
        %v1075 = vunpack.c.h.b16 %v456
        %v1076 = vunpack.c.l.b16 %v457
        %v1077 = vunpack.c.h.b16 %v457
        %v1078 = vunpack.c.l.b16 %v458
        %v1079 = vunpack.c.h.b16 %v458
        %v1080 = vunpack.c.l.b16 %v459
        %v1081 = vunpack.c.h.b16 %v459
        %v1082 = vunpack.c.l.b16 %v460
        %v1083 = vunpack.c.h.b16 %v460
        %v1084 = vunpack.c.l.b16 %v461
        %v1085 = vunpack.c.h.b16 %v461
        %v1086 = vunpack.c.l.b16 %v462
        %v1087 = vunpack.c.h.b16 %v462
        %v1088 = vunpack.c.l.b16 %v463
        %v1089 = vunpack.c.h.b16 %v463
        %v1090 = vunpack.c.l.b16 %v464
        %v1091 = vunpack.c.h.b16 %v464
        %v1092 = vunpack.c.l.b16 %v465
        %v1093 = vunpack.c.h.b16 %v465
        %v1094 = vunpack.c.l.b16 %v466
        %v1095 = vunpack.c.h.b16 %v466
        %v1096 = vunpack.c.l.b16 %v467
        %v1097 = vunpack.c.h.b16 %v467
        %v1098 = vunpack.c.l.b16 %v468
        %v1099 = vunpack.c.h.b16 %v468
        %v1100 = vunpack.c.l.b16 %v469
        %v1101 = vunpack.c.h.b16 %v469
        %v1102 = vunpack.c.l.b16 %v470
        %v1103 = vunpack.c.h.b16 %v470
        %v1104 = vunpack.c.l.b16 %v471
        %v1105 = vunpack.c.h.b16 %v471
        %v1106 = vunpack.c.l.b16 %v472
        %v1107 = vunpack.c.h.b16 %v472
        %v1108 = vunpack.c.l.b16 %v473
        %v1109 = vunpack.c.h.b16 %v473
        %v1110 = vunpack.c.l.b16 %v474
        %v1111 = vunpack.c.h.b16 %v474
        %v1112 = vunpack.c.l.b16 %v475
        %v1113 = vunpack.c.h.b16 %v475
        %v1114 = vunpack.c.l.b16 %v476
        %v1115 = vunpack.c.h.b16 %v476
        %v1116 = vunpack.c.l.b16 %v477
        %v1117 = vunpack.c.h.b16 %v477
        %v1118 = vunpack.c.l.b16 %v478
        %v1119 = vunpack.c.h.b16 %v478
        %v1120 = vunpack.c.l.b16 %v479
        %v1121 = vunpack.c.h.b16 %v479
        %v1122 = vunpack.c.l.b16 %v480
        %v1123 = vunpack.c.h.b16 %v480
        %v1124 = vunpack.c.l.b16 %v481
        %v1125 = vunpack.c.h.b16 %v481
        %v1126 = vunpack.c.l.b16 %v482
        %v1127 = vunpack.c.h.b16 %v482
        %v1128 = vunpack.c.l.b16 %v483
        %v1129 = vunpack.c.h.b16 %v483
        %v1130 = vunpack.c.l.b16 %v484
        %v1131 = vunpack.c.h.b16 %v484
        %v1132 = vunpack.c.l.b16 %v485
        %v1133 = vunpack.c.h.b16 %v485
        %v1134 = vunpack.c.l.b16 %v486
        %v1135 = vunpack.c.h.b16 %v486
        %v1136 = vunpack.c.l.b16 %v487
        %v1137 = vunpack.c.h.b16 %v487
        %v1138 = vunpack.c.l.b16 %v488
        %v1139 = vunpack.c.h.b16 %v488
        %v1140 = vunpack.c.l.b16 %v489
        %v1141 = vunpack.c.h.b16 %v489
        %v1142 = vunpack.c.l.b16 %v490
        %v1143 = vunpack.c.h.b16 %v490
        %v1144 = vunpack.c.l.b16 %v491
        %v1145 = vunpack.c.h.b16 %v491
        %v1146 = vunpack.c.l.b16 %v492
        %v1147 = vunpack.c.h.b16 %v492
        %v1148 = vunpack.c.l.b16 %v493
        %v1149 = vunpack.c.h.b16 %v493
        %v1150 = vunpack.c.l.b16 %v494
        %v1151 = vunpack.c.h.b16 %v494
        %v1152 = vunpack.c.l.b16 %v495
        %v1153 = vunpack.c.h.b16 %v495
        %v1154 = vunpack.c.l.b16 %v496
        %v1155 = vunpack.c.h.b16 %v496
        %v1156 = vunpack.c.l.b16 %v497
        %v1157 = vunpack.c.h.b16 %v497
        %v1158 = vunpack.c.l.b16 %v498
        %v1159 = vunpack.c.h.b16 %v498
        %v1160 = vunpack.c.l.b16 %v499
        %v1161 = vunpack.c.h.b16 %v499
        %v1162 = vunpack.c.l.b16 %v500
        %v1163 = vunpack.c.h.b16 %v500
        %v1164 = vunpack.c.l.b16 %v501
        %v1165 = vunpack.c.h.b16 %v501
        %v1166 = vunpack.c.l.b16 %v502
        %v1167 = vunpack.c.h.b16 %v502
        %v1168 = vunpack.c.l.b16 %v503
        %v1169 = vunpack.c.h.b16 %v503
        %v1170 = vunpack.c.l.b16 %v504
        %v1171 = vunpack.c.h.b16 %v504
        %v1172 = vunpack.c.l.b16 %v505
        %v1173 = vunpack.c.h.b16 %v505
        %v1174 = vunpack.c.l.b16 %v506
        %v1175 = vunpack.c.h.b16 %v506
        %v1176 = vunpack.c.l.b16 %v507
        %v1177 = vunpack.c.h.b16 %v507
        %v1178 = vunpack.c.l.b16 %v508
        %v1179 = vunpack.c.h.b16 %v508
        %v1180 = vunpack.c.l.b16 %v509
        %v1181 = vunpack.c.h.b16 %v509
        %v1182 = vunpack.c.l.b16 %v510
        %v1183 = vunpack.c.h.b16 %v510
        %v1184 = vunpack.c.l.b16 %v511
        %v1185 = vunpack.c.h.b16 %v511
        %v1186 = vunpack.c.l.b16 %v512
        %v1187 = vunpack.c.h.b16 %v512
        %v1188 = vunpack.c.l.b16 %v513
        %v1189 = vunpack.c.h.b16 %v513
        %v1190 = vunpack.c.l.b16 %v514
        %v1191 = vunpack.c.h.b16 %v514
        %v1192 = vunpack.c.l.b16 %v515
        %v1193 = vunpack.c.h.b16 %v515
        %v1194 = vunpack.c.l.b16 %v516
        %v1195 = vunpack.c.h.b16 %v516
        %v1196 = vunpack.c.l.b16 %v517
        %v1197 = vunpack.c.h.b16 %v517
        %v1198 = vunpack.c.l.b16 %v518
        %v1199 = vunpack.c.h.b16 %v518
        %v1200 = vunpack.c.l.b16 %v519
        %v1201 = vunpack.c.h.b16 %v519
        %v1202 = vunpack.c.l.b16 %v520
        %v1203 = vunpack.c.h.b16 %v520
        %v1204 = vunpack.c.l.b16 %v521
        %v1205 = vunpack.c.h.b16 %v521
        %v1206 = vunpack.c.l.b16 %v522
        %v1207 = vunpack.c.h.b16 %v522
        %v1208 = vunpack.c.l.b16 %v523
        %v1209 = vunpack.c.h.b16 %v523
        %v1210 = vunpack.c.l.b16 %v524
        %v1211 = vunpack.c.h.b16 %v524
        %v1212 = vunpack.c.l.b16 %v525
        %v1213 = vunpack.c.h.b16 %v525
        %v1214 = vunpack.c.l.b16 %v526
        %v1215 = vunpack.c.h.b16 %v526
        %v1216 = vunpack.c.l.b16 %v527
        %v1217 = vunpack.c.h.b16 %v527
        %v1218 = vunpack.c.l.b16 %v528
        %v1219 = vunpack.c.h.b16 %v528
        %v1220 = vunpack.c.l.b16 %v529
        %v1221 = vunpack.c.h.b16 %v529
        %v1222 = vunpack.c.l.b16 %v530
        %v1223 = vunpack.c.h.b16 %v530
        %v1224 = vunpack.c.l.b16 %v531
        %v1225 = vunpack.c.h.b16 %v531
        %v1226 = vunpack.c.l.b16 %v532
        %v1227 = vunpack.c.h.b16 %v532
        %v1228 = vunpack.c.l.b16 %v533
        %v1229 = vunpack.c.h.b16 %v533
        %v1230 = vunpack.c.l.b16 %v534
        %v1231 = vunpack.c.h.b16 %v534
        %v1232 = vunpack.c.l.b16 %v535
        %v1233 = vunpack.c.h.b16 %v535
        %v1234 = vunpack.c.l.b16 %v536
        %v1235 = vunpack.c.h.b16 %v536
        %v1236 = vunpack.c.l.b16 %v537
        %v1237 = vunpack.c.h.b16 %v537
        %v1238 = vunpack.c.l.b16 %v538
        %v1239 = vunpack.c.h.b16 %v538
        %v1240 = vunpack.c.l.b16 %v539
        %v1241 = vunpack.c.h.b16 %v539
        %v1242 = vunpack.c.l.b16 %v540
        %v1243 = vunpack.c.h.b16 %v540
        %v1244 = vunpack.c.l.b16 %v541
        %v1245 = vunpack.c.h.b16 %v541
        %v1246 = vunpack.c.l.b16 %v542
        %v1247 = vunpack.c.h.b16 %v542
        %v1248 = vunpack.c.l.b16 %v543
        %v1249 = vunpack.c.h.b16 %v543
        %v1250 = vunpack.c.l.b16 %v544
        %v1251 = vunpack.c.h.b16 %v544
        %v1252 = vunpack.c.l.b16 %v545
        %v1253 = vunpack.c.h.b16 %v545
        %v1254 = vunpack.c.l.b16 %v546
        %v1255 = vunpack.c.h.b16 %v546
        %v1256 = vunpack.c.l.b16 %v547
        %v1257 = vunpack.c.h.b16 %v547
        %v1258 = vunpack.c.l.b16 %v548
        %v1259 = vunpack.c.h.b16 %v548
        %v1260 = vunpack.c.l.b16 %v549
        %v1261 = vunpack.c.h.b16 %v549
        %v1262 = vunpack.c.l.b16 %v550
        %v1263 = vunpack.c.h.b16 %v550
        %v1264 = vunpack.c.l.b16 %v551
        %v1265 = vunpack.c.h.b16 %v551
        %v1266 = vunpack.c.l.b16 %v552
        %v1267 = vunpack.c.h.b16 %v552
        %v1268 = vunpack.c.l.b16 %v553
        %v1269 = vunpack.c.h.b16 %v553
        %v1270 = vunpack.c.l.b16 %v554
        %v1271 = vunpack.c.h.b16 %v554
        %v1272 = vunpack.c.l.b16 %v555
        %v1273 = vunpack.c.h.b16 %v555
        %v1274 = vunpack.c.l.b16 %v556
        %v1275 = vunpack.c.h.b16 %v556
        %v1276 = vunpack.c.l.b16 %v557
        %v1277 = vunpack.c.h.b16 %v557
        %v1278 = vunpack.c.l.b16 %v558
        %v1279 = vunpack.c.h.b16 %v558
        %v1280 = vunpack.c.l.b16 %v559
        %v1281 = vunpack.c.h.b16 %v559
        %v1282 = vunpack.c.l.b16 %v560
        %v1283 = vunpack.c.h.b16 %v560
        %v1284 = vunpack.c.l.b16 %v561
        %v1285 = vunpack.c.h.b16 %v561
        %v1286 = vunpack.c.l.b16 %v562
        %v1287 = vunpack.c.h.b16 %v562
        %v1288 = vunpack.c.l.b16 %v563
        %v1289 = vunpack.c.h.b16 %v563
        %v1290 = vunpack.c.l.b16 %v564
        %v1291 = vunpack.c.h.b16 %v564
        %v1292 = vunpack.c.l.b16 %v565
        %v1293 = vunpack.c.h.b16 %v565
        %v1294 = vunpack.c.l.b16 %v566
        %v1295 = vunpack.c.h.b16 %v566
        %v1296 = vunpack.c.l.b16 %v567
        %v1297 = vunpack.c.h.b16 %v567
        %v1298 = vunpack.c.l.b16 %v568
        %v1299 = vunpack.c.h.b16 %v568
        %v1300 = vunpack.c.l.b16 %v569
        %v1301 = vunpack.c.h.b16 %v569
        %v1302 = vunpack.c.l.b16 %v570
        %v1303 = vunpack.c.h.b16 %v570
        %v1304 = vunpack.c.l.b16 %v571
        %v1305 = vunpack.c.h.b16 %v571
        %v1306 = vunpack.c.l.b16 %v572
        %v1307 = vunpack.c.h.b16 %v572
        %v1308 = vunpack.c.l.b16 %v573
        %v1309 = vunpack.c.h.b16 %v573
        %v1310 = vunpack.c.l.b16 %v574
        %v1311 = vunpack.c.h.b16 %v574
        %v1312 = vunpack.c.l.b16 %v575
        %v1313 = vunpack.c.h.b16 %v575
        %v1314 = vunpack.c.l.b16 %v576
        %v1315 = vunpack.c.h.b16 %v576
        %v1316 = vunpack.c.l.b16 %v577
        %v1317 = vunpack.c.h.b16 %v577
        %v1318 = vunpack.c.l.b16 %v578
        %v1319 = vunpack.c.h.b16 %v578
        %v1320 = vunpack.c.l.b16 %v579
        %v1321 = vunpack.c.h.b16 %v579
        %v1322 = vunpack.c.l.b16 %v580
        %v1323 = vunpack.c.h.b16 %v580
        %v1324 = vunpack.c.l.b16 %v581
        %v1325 = vunpack.c.h.b16 %v581
        %v1326 = vunpack.c.l.b16 %v582
        %v1327 = vunpack.c.h.b16 %v582
        %v1328 = vunpack.c.l.b16 %v583
        %v1329 = vunpack.c.h.b16 %v583
        %v1330 = vunpack.c.l.b16 %v584
        %v1331 = vunpack.c.h.b16 %v584
        %v1332 = vunpack.c.l.b16 %v585
        %v1333 = vunpack.c.h.b16 %v585
        %v1334 = vunpack.c.l.b16 %v586
        %v1335 = vunpack.c.h.b16 %v586
        %v1336 = vunpack.c.l.b16 %v587
        %v1337 = vunpack.c.h.b16 %v587
        %v1338 = vunpack.c.l.b16 %v588
        %v1339 = vunpack.c.h.b16 %v588
        %v1340 = vunpack.c.l.b16 %v589
        %v1341 = vunpack.c.h.b16 %v589
        %v1342 = vunpack.c.l.b16 %v590
        %v1343 = vunpack.c.h.b16 %v590
        %v1344 = vunpack.c.l.b16 %v591
        %v1345 = vunpack.c.h.b16 %v591
        %v1346 = vunpack.c.l.b16 %v592
        %v1347 = vunpack.c.h.b16 %v592
        %v1348 = vunpack.c.l.b16 %v593
        %v1349 = vunpack.c.h.b16 %v593
        %v1350 = vunpack.c.l.b16 %v594
        %v1351 = vunpack.c.h.b16 %v594
        %v1352 = vunpack.c.l.b16 %v595
        %v1353 = vunpack.c.h.b16 %v595
        %v1354 = vunpack.c.l.b16 %v596
        %v1355 = vunpack.c.h.b16 %v596
        %v1356 = vunpack.c.l.b16 %v597
        %v1357 = vunpack.c.h.b16 %v597
        %v1358 = vunpack.c.l.b16 %v598
        %v1359 = vunpack.c.h.b16 %v598
        %v1360 = vunpack.c.l.b16 %v599
        %v1361 = vunpack.c.h.b16 %v599
        %v1362 = vunpack.c.l.b16 %v600
        %v1363 = vunpack.c.h.b16 %v600
        %v1364 = vunpack.c.l.b16 %v601
        %v1365 = vunpack.c.h.b16 %v601
        %v1366 = vunpack.c.l.b16 %v602
        %v1367 = vunpack.c.h.b16 %v602
        %v1368 = vunpack.c.l.b16 %v603
        %v1369 = vunpack.c.h.b16 %v603
        %v1370 = vunpack.c.l.b16 %v604
        %v1371 = vunpack.c.h.b16 %v604
        %v1372 = vunpack.c.l.b16 %v605
        %v1373 = vunpack.c.h.b16 %v605
        %v1374 = vunpack.c.l.b16 %v606
        %v1375 = vunpack.c.h.b16 %v606
        %v1376 = vunpack.c.l.b16 %v607
        %v1377 = vunpack.c.h.b16 %v607
        %v1378 = vunpack.c.l.b16 %v608
        %v1379 = vunpack.c.h.b16 %v608
        %v1380 = vunpack.c.l.b16 %v609
        %v1381 = vunpack.c.h.b16 %v609
        %v1382 = vunpack.c.l.b16 %v610
        %v1383 = vunpack.c.h.b16 %v610
        %v1384 = vunpack.c.l.b16 %v611
        %v1385 = vunpack.c.h.b16 %v611
        %v1386 = vunpack.c.l.b16 %v612
        %v1387 = vunpack.c.h.b16 %v612
        %v1388 = vunpack.c.l.b16 %v613
        %v1389 = vunpack.c.h.b16 %v613
        %v1390 = vunpack.c.l.b16 %v614
        %v1391 = vunpack.c.h.b16 %v614
        %v1392 = vunpack.c.l.b16 %v615
        %v1393 = vunpack.c.h.b16 %v615
        %v1394 = vunpack.c.l.b16 %v616
        %v1395 = vunpack.c.h.b16 %v616
        %v1396 = vunpack.c.l.b16 %v617
        %v1397 = vunpack.c.h.b16 %v617
        %v1398 = vunpack.c.l.b16 %v618
        %v1399 = vunpack.c.h.b16 %v618
        %v1400 = vunpack.c.l.b16 %v619
        %v1401 = vunpack.c.h.b16 %v619
        %v1402 = vunpack.c.l.b16 %v620
        %v1403 = vunpack.c.h.b16 %v620
        %v1404 = vunpack.c.l.b16 %v621
        %v1405 = vunpack.c.h.b16 %v621
        %v1406 = vunpack.c.l.b16 %v622
        %v1407 = vunpack.c.h.b16 %v622
        %v1408 = vunpack.c.l.b16 %v623
        %v1409 = vunpack.c.h.b16 %v623
        %v1410 = vunpack.c.l.b16 %v624
        %v1411 = vunpack.c.h.b16 %v624
        %v1412 = vunpack.c.l.b16 %v625
        %v1413 = vunpack.c.h.b16 %v625
        %v1414 = vunpack.c.l.b16 %v626
        %v1415 = vunpack.c.h.b16 %v626
        %v1416 = vunpack.c.l.b16 %v627
        %v1417 = vunpack.c.h.b16 %v627
        %v1418 = vunpack.c.l.b16 %v628
        %v1419 = vunpack.c.h.b16 %v628
        %v1420 = vunpack.c.l.b16 %v629
        %v1421 = vunpack.c.h.b16 %v629
        %v1422 = vunpack.c.l.b16 %v630
        %v1423 = vunpack.c.h.b16 %v630
        %v1424 = vunpack.c.l.b16 %v631
        %v1425 = vunpack.c.h.b16 %v631
        %v1426 = vunpack.c.l.b16 %v632
        %v1427 = vunpack.c.h.b16 %v632
        %v1428 = vunpack.c.l.b16 %v633
        %v1429 = vunpack.c.h.b16 %v633
        %v1430 = vunpack.c.l.b16 %v634
        %v1431 = vunpack.c.h.b16 %v634
        %v1432 = vunpack.c.l.b16 %v635
        %v1433 = vunpack.c.h.b16 %v635
        %v1434 = vunpack.c.l.b16 %v636
        %v1435 = vunpack.c.h.b16 %v636
        %v1436 = vunpack.c.l.b16 %v637
        %v1437 = vunpack.c.h.b16 %v637
        %v1438 = vunpack.c.l.b16 %v638
        %v1439 = vunpack.c.h.b16 %v638
        %v1440 = vunpack.c.l.b16 %v639
        %v1441 = vunpack.c.h.b16 %v639
        %v1442 = vunpack.c.l.b16 %v640
        %v1443 = vunpack.c.h.b16 %v640
        %v1444 = vunpack.c.l.b16 %v641
        %v1445 = vunpack.c.h.b16 %v641
        %v1446 = vunpack.c.l.b16 %v642
        %v1447 = vunpack.c.h.b16 %v642
        %v1448 = vunpack.c.l.b16 %v643
        %v1449 = vunpack.c.h.b16 %v643
        %v1450 = vunpack.c.l.b16 %v644
        %v1451 = vunpack.c.h.b16 %v644
        %v1452 = vunpack.c.l.b16 %v645
        %v1453 = vunpack.c.h.b16 %v645
        %v1454 = vunpack.c.l.b16 %v646
        %v1455 = vunpack.c.h.b16 %v646
        %v1456 = vunpack.c.l.b16 %v647
        %v1457 = vunpack.c.h.b16 %v647
        %v1458 = vunpack.c.l.b16 %v648
        %v1459 = vunpack.c.h.b16 %v648
        %v1460 = vunpack.c.l.b16 %v649
        %v1461 = vunpack.c.h.b16 %v649
        %v1462 = vunpack.c.l.b16 %v650
        %v1463 = vunpack.c.h.b16 %v650
        %v1464 = vunpack.c.l.b16 %v651
        %v1465 = vunpack.c.h.b16 %v651
        %v1466 = vunpack.c.l.b16 %v652
        %v1467 = vunpack.c.h.b16 %v652
        %v1468 = vunpack.c.l.b16 %v653
        %v1469 = vunpack.c.h.b16 %v653
        %v1470 = vunpack.c.l.b16 %v654
        %v1471 = vunpack.c.h.b16 %v654
        %v1472 = vunpack.c.l.b16 %v655
        %v1473 = vunpack.c.h.b16 %v655
        %v1474 = vunpack.c.l.b16 %v656
        %v1475 = vunpack.c.h.b16 %v656
        %v1476 = vunpack.c.l.b16 %v657
        %v1477 = vunpack.c.h.b16 %v657
        %v1478 = vunpack.c.l.b16 %v658
        %v1479 = vunpack.c.h.b16 %v658
        %v1480 = vunpack.c.l.b16 %v659
        %v1481 = vunpack.c.h.b16 %v659
        %v1482 = vunpack.c.l.b16 %v660
        %v1483 = vunpack.c.h.b16 %v660
        %v1484 = vunpack.c.l.b16 %v661
        %v1485 = vunpack.c.h.b16 %v661
        %v1486 = vunpack.c.l.b16 %v662
        %v1487 = vunpack.c.h.b16 %v662
        %v1488 = vunpack.c.l.b16 %v663
        %v1489 = vunpack.c.h.b16 %v663
        %v1490 = vunpack.c.l.b16 %v664
        %v1491 = vunpack.c.h.b16 %v664
        %v1492 = vunpack.c.l.b16 %v665
        %v1493 = vunpack.c.h.b16 %v665
        %v1494 = vunpack.c.l.b16 %v666
        %v1495 = vunpack.c.h.b16 %v666
        %v1496 = vunpack.c.l.b16 %v667
        %v1497 = vunpack.c.h.b16 %v667
        %v1498 = vunpack.c.l.b16 %v668
        %v1499 = vunpack.c.h.b16 %v668
        %v1500 = vunpack.c.l.b16 %v669
        %v1501 = vunpack.c.h.b16 %v669
        %v1502 = vunpack.c.l.b16 %v670
        %v1503 = vunpack.c.h.b16 %v670
        %v1504 = vunpack.c.l.b16 %v671
        %v1505 = vunpack.c.h.b16 %v671
        %v1506 = vunpack.c.l.b16 %v672
        %v1507 = vunpack.c.h.b16 %v672
        %v1508 = vunpack.c.l.b16 %v673
        %v1509 = vunpack.c.h.b16 %v673
        %v1510 = vpack.c.b16 %v1000, %v998
        %v1511 = vpack.c.b16 %v1001, %v999
        %v1512 = vpack.c.b16 %v1004, %v1002
        %v1513 = vpack.c.b16 %v1005, %v1003
        %v1514 = vpack.c.b16 %v1008, %v1006
        %v1515 = vpack.c.b16 %v1009, %v1007
        %v1516 = vpack.c.b16 %v1012, %v1010
        %v1517 = vpack.c.b16 %v1013, %v1011
        %v1518 = vpack.c.b16 %v1016, %v1014
        %v1519 = vpack.c.b16 %v1017, %v1015
        %v1520 = vpack.c.b16 %v1020, %v1018
        %v1521 = vpack.c.b16 %v1021, %v1019
        %v1522 = vpack.c.b16 %v1024, %v1022
        %v1523 = vpack.c.b16 %v1025, %v1023
        %v1524 = vpack.c.b16 %v1028, %v1026
        %v1525 = vpack.c.b16 %v1029, %v1027
        %v1526 = vpack.c.b16 %v1032, %v1030
        %v1527 = vpack.c.b16 %v1033, %v1031
        %v1528 = vpack.c.b16 %v1036, %v1034
        %v1529 = vpack.c.b16 %v1037, %v1035
        %v1530 = vpack.c.b16 %v1040, %v1038
        %v1531 = vpack.c.b16 %v1041, %v1039
        %v1532 = vpack.c.b16 %v1044, %v1042
        %v1533 = vpack.c.b16 %v1045, %v1043
        %v1534 = vpack.c.b16 %v1048, %v1046
        %v1535 = vpack.c.b16 %v1049, %v1047
        %v1536 = vpack.c.b16 %v1052, %v1050
        %v1537 = vpack.c.b16 %v1053, %v1051
        %v1538 = vpack.c.b16 %v1056, %v1054
        %v1539 = vpack.c.b16 %v1057, %v1055
        %v1540 = vpack.c.b16 %v1060, %v1058
        %v1541 = vpack.c.b16 %v1061, %v1059
        %v1542 = vpack.c.b16 %v1064, %v1062
        %v1543 = vpack.c.b16 %v1065, %v1063
        %v1544 = vpack.c.b16 %v1068, %v1066
        %v1545 = vpack.c.b16 %v1069, %v1067
        %v1546 = vpack.c.b16 %v1072, %v1070
        %v1547 = vpack.c.b16 %v1073, %v1071
        %v1548 = vpack.c.b16 %v1076, %v1074
        %v1549 = vpack.c.b16 %v1077, %v1075
        %v1550 = vpack.c.b16 %v1080, %v1078
        %v1551 = vpack.c.b16 %v1081, %v1079
        %v1552 = vpack.c.b16 %v1084, %v1082
        %v1553 = vpack.c.b16 %v1085, %v1083
        %v1554 = vpack.c.b16 %v1088, %v1086
        %v1555 = vpack.c.b16 %v1089, %v1087
        %v1556 = vpack.c.b16 %v1092, %v1090
        %v1557 = vpack.c.b16 %v1093, %v1091
        %v1558 = vpack.c.b16 %v1096, %v1094
        %v1559 = vpack.c.b16 %v1097, %v1095
        %v1560 = vpack.c.b16 %v1100, %v1098
        %v1561 = vpack.c.b16 %v1101, %v1099
        %v1562 = vpack.c.b16 %v1104, %v1102
        %v1563 = vpack.c.b16 %v1105, %v1103
        %v1564 = vpack.c.b16 %v1108, %v1106
        %v1565 = vpack.c.b16 %v1109, %v1107
        %v1566 = vpack.c.b16 %v1112, %v1110
        %v1567 = vpack.c.b16 %v1113, %v1111
        %v1568 = vpack.c.b16 %v1116, %v1114
        %v1569 = vpack.c.b16 %v1117, %v1115
        %v1570 = vpack.c.b16 %v1120, %v1118
        %v1571 = vpack.c.b16 %v1121, %v1119
        %v1572 = vpack.c.b16 %v1124, %v1122
        %v1573 = vpack.c.b16 %v1125, %v1123
        %v1574 = vpack.c.b16 %v1128, %v1126
        %v1575 = vpack.c.b16 %v1129, %v1127
        %v1576 = vpack.c.b16 %v1132, %v1130
        %v1577 = vpack.c.b16 %v1133, %v1131
        %v1578 = vpack.c.b16 %v1136, %v1134
        %v1579 = vpack.c.b16 %v1137, %v1135
        %v1580 = vpack.c.b16 %v1140, %v1138
        %v1581 = vpack.c.b16 %v1141, %v1139
        %v1582 = vpack.c.b16 %v1144, %v1142
        %v1583 = vpack.c.b16 %v1145, %v1143
        %v1584 = vpack.c.b16 %v1148, %v1146
        %v1585 = vpack.c.b16 %v1149, %v1147
        %v1586 = vpack.c.b16 %v1152, %v1150
        %v1587 = vpack.c.b16 %v1153, %v1151
        %v1588 = vpack.c.b16 %v1156, %v1154
        %v1589 = vpack.c.b16 %v1157, %v1155
        %v1590 = vpack.c.b16 %v1160, %v1158
        %v1591 = vpack.c.b16 %v1161, %v1159
        %v1592 = vpack.c.b16 %v1164, %v1162
        %v1593 = vpack.c.b16 %v1165, %v1163
        %v1594 = vpack.c.b16 %v1168, %v1166
        %v1595 = vpack.c.b16 %v1169, %v1167
        %v1596 = vpack.c.b16 %v1172, %v1170
        %v1597 = vpack.c.b16 %v1173, %v1171
        %v1598 = vpack.c.b16 %v1176, %v1174
        %v1599 = vpack.c.b16 %v1177, %v1175
        %v1600 = vpack.c.b16 %v1180, %v1178
        %v1601 = vpack.c.b16 %v1181, %v1179
        %v1602 = vpack.c.b16 %v1184, %v1182
        %v1603 = vpack.c.b16 %v1185, %v1183
        %v1604 = vpack.c.b16 %v1188, %v1186
        %v1605 = vpack.c.b16 %v1189, %v1187
        %v1606 = vpack.c.b16 %v1192, %v1190
        %v1607 = vpack.c.b16 %v1193, %v1191
        %v1608 = vpack.c.b16 %v1196, %v1194
        %v1609 = vpack.c.b16 %v1197, %v1195
        %v1610 = vpack.c.b16 %v1200, %v1198
        %v1611 = vpack.c.b16 %v1201, %v1199
        %v1612 = vpack.c.b16 %v1204, %v1202
        %v1613 = vpack.c.b16 %v1205, %v1203
        %v1614 = vpack.c.b16 %v1208, %v1206
        %v1615 = vpack.c.b16 %v1209, %v1207
        %v1616 = vpack.c.b16 %v1212, %v1210
        %v1617 = vpack.c.b16 %v1213, %v1211
        %v1618 = vpack.c.b16 %v1216, %v1214
        %v1619 = vpack.c.b16 %v1217, %v1215
        %v1620 = vpack.c.b16 %v1220, %v1218
        %v1621 = vpack.c.b16 %v1221, %v1219
        %v1622 = vpack.c.b16 %v1224, %v1222
        %v1623 = vpack.c.b16 %v1225, %v1223
        %v1624 = vpack.c.b16 %v1228, %v1226
        %v1625 = vpack.c.b16 %v1229, %v1227
        %v1626 = vpack.c.b16 %v1232, %v1230
        %v1627 = vpack.c.b16 %v1233, %v1231
        %v1628 = vpack.c.b16 %v1236, %v1234
        %v1629 = vpack.c.b16 %v1237, %v1235
        %v1630 = vpack.c.b16 %v1240, %v1238
        %v1631 = vpack.c.b16 %v1241, %v1239
        %v1632 = vpack.c.b16 %v1244, %v1242
        %v1633 = vpack.c.b16 %v1245, %v1243
        %v1634 = vpack.c.b16 %v1248, %v1246
        %v1635 = vpack.c.b16 %v1249, %v1247
        %v1636 = vpack.c.b16 %v1252, %v1250
        %v1637 = vpack.c.b16 %v1253, %v1251
        %v1638 = vpack.c.b16 %v1256, %v1254
        %v1639 = vpack.c.b16 %v1257, %v1255
        %v1640 = vpack.c.b16 %v1260, %v1258
        %v1641 = vpack.c.b16 %v1261, %v1259
        %v1642 = vpack.c.b16 %v1264, %v1262
        %v1643 = vpack.c.b16 %v1265, %v1263
        %v1644 = vpack.c.b16 %v1268, %v1266
        %v1645 = vpack.c.b16 %v1269, %v1267
        %v1646 = vpack.c.b16 %v1272, %v1270
        %v1647 = vpack.c.b16 %v1273, %v1271
        %v1648 = vpack.c.b16 %v1276, %v1274
        %v1649 = vpack.c.b16 %v1277, %v1275
        %v1650 = vpack.c.b16 %v1280, %v1278
        %v1651 = vpack.c.b16 %v1281, %v1279
        %v1652 = vpack.c.b16 %v1284, %v1282
        %v1653 = vpack.c.b16 %v1285, %v1283
        %v1654 = vpack.c.b16 %v1288, %v1286
        %v1655 = vpack.c.b16 %v1289, %v1287
        %v1656 = vpack.c.b16 %v1292, %v1290
        %v1657 = vpack.c.b16 %v1293, %v1291
        %v1658 = vpack.c.b16 %v1296, %v1294
        %v1659 = vpack.c.b16 %v1297, %v1295
        %v1660 = vpack.c.b16 %v1300, %v1298
        %v1661 = vpack.c.b16 %v1301, %v1299
        %v1662 = vpack.c.b16 %v1304, %v1302
        %v1663 = vpack.c.b16 %v1305, %v1303
        %v1664 = vpack.c.b16 %v1308, %v1306
        %v1665 = vpack.c.b16 %v1309, %v1307
        %v1666 = vpack.c.b16 %v1312, %v1310
        %v1667 = vpack.c.b16 %v1313, %v1311
        %v1668 = vpack.c.b16 %v1316, %v1314
        %v1669 = vpack.c.b16 %v1317, %v1315
        %v1670 = vpack.c.b16 %v1320, %v1318
        %v1671 = vpack.c.b16 %v1321, %v1319
        %v1672 = vpack.c.b16 %v1324, %v1322
        %v1673 = vpack.c.b16 %v1325, %v1323
        %v1674 = vpack.c.b16 %v1328, %v1326
        %v1675 = vpack.c.b16 %v1329, %v1327
        %v1676 = vpack.c.b16 %v1332, %v1330
        %v1677 = vpack.c.b16 %v1333, %v1331
        %v1678 = vpack.c.b16 %v1336, %v1334
        %v1679 = vpack.c.b16 %v1337, %v1335
        %v1680 = vpack.c.b16 %v1340, %v1338
        %v1681 = vpack.c.b16 %v1341, %v1339
        %v1682 = vpack.c.b16 %v1344, %v1342
        %v1683 = vpack.c.b16 %v1345, %v1343
        %v1684 = vpack.c.b16 %v1348, %v1346
        %v1685 = vpack.c.b16 %v1349, %v1347
        %v1686 = vpack.c.b16 %v1352, %v1350
        %v1687 = vpack.c.b16 %v1353, %v1351
        %v1688 = vpack.c.b16 %v1356, %v1354
        %v1689 = vpack.c.b16 %v1357, %v1355
        %v1690 = vpack.c.b16 %v1360, %v1358
        %v1691 = vpack.c.b16 %v1361, %v1359
        %v1692 = vpack.c.b16 %v1364, %v1362
        %v1693 = vpack.c.b16 %v1365, %v1363
        %v1694 = vpack.c.b16 %v1368, %v1366
        %v1695 = vpack.c.b16 %v1369, %v1367
        %v1696 = vpack.c.b16 %v1372, %v1370
        %v1697 = vpack.c.b16 %v1373, %v1371
        %v1698 = vpack.c.b16 %v1376, %v1374
        %v1699 = vpack.c.b16 %v1377, %v1375
        %v1700 = vpack.c.b16 %v1380, %v1378
        %v1701 = vpack.c.b16 %v1381, %v1379
        %v1702 = vpack.c.b16 %v1384, %v1382
        %v1703 = vpack.c.b16 %v1385, %v1383
        %v1704 = vpack.c.b16 %v1388, %v1386
        %v1705 = vpack.c.b16 %v1389, %v1387
        %v1706 = vpack.c.b16 %v1392, %v1390
        %v1707 = vpack.c.b16 %v1393, %v1391
        %v1708 = vpack.c.b16 %v1396, %v1394
        %v1709 = vpack.c.b16 %v1397, %v1395
        %v1710 = vpack.c.b16 %v1400, %v1398
        %v1711 = vpack.c.b16 %v1401, %v1399
        %v1712 = vpack.c.b16 %v1404, %v1402
        %v1713 = vpack.c.b16 %v1405, %v1403
        %v1714 = vpack.c.b16 %v1408, %v1406
        %v1715 = vpack.c.b16 %v1409, %v1407
        %v1716 = vpack.c.b16 %v1412, %v1410
        %v1717 = vpack.c.b16 %v1413, %v1411
        %v1718 = vpack.c.b16 %v1416, %v1414
        %v1719 = vpack.c.b16 %v1417, %v1415
        %v1720 = vpack.c.b16 %v1420, %v1418
        %v1721 = vpack.c.b16 %v1421, %v1419
        %v1722 = vpack.c.b16 %v1424, %v1422
        %v1723 = vpack.c.b16 %v1425, %v1423
        %v1724 = vpack.c.b16 %v1428, %v1426
        %v1725 = vpack.c.b16 %v1429, %v1427
        %v1726 = vpack.c.b16 %v1432, %v1430
        %v1727 = vpack.c.b16 %v1433, %v1431
        %v1728 = vpack.c.b16 %v1436, %v1434
        %v1729 = vpack.c.b16 %v1437, %v1435
        %v1730 = vpack.c.b16 %v1440, %v1438
        %v1731 = vpack.c.b16 %v1441, %v1439
        %v1732 = vpack.c.b16 %v1444, %v1442
        %v1733 = vpack.c.b16 %v1445, %v1443
        %v1734 = vpack.c.b16 %v1448, %v1446
        %v1735 = vpack.c.b16 %v1449, %v1447
        %v1736 = vpack.c.b16 %v1452, %v1450
        %v1737 = vpack.c.b16 %v1453, %v1451
        %v1738 = vpack.c.b16 %v1456, %v1454
        %v1739 = vpack.c.b16 %v1457, %v1455
        %v1740 = vpack.c.b16 %v1460, %v1458
        %v1741 = vpack.c.b16 %v1461, %v1459
        %v1742 = vpack.c.b16 %v1464, %v1462
        %v1743 = vpack.c.b16 %v1465, %v1463
        %v1744 = vpack.c.b16 %v1468, %v1466
        %v1745 = vpack.c.b16 %v1469, %v1467
        %v1746 = vpack.c.b16 %v1472, %v1470
        %v1747 = vpack.c.b16 %v1473, %v1471
        %v1748 = vpack.c.b16 %v1476, %v1474
        %v1749 = vpack.c.b16 %v1477, %v1475
        %v1750 = vpack.c.b16 %v1480, %v1478
        %v1751 = vpack.c.b16 %v1481, %v1479
        %v1752 = vpack.c.b16 %v1484, %v1482
        %v1753 = vpack.c.b16 %v1485, %v1483
        %v1754 = vpack.c.b16 %v1488, %v1486
        %v1755 = vpack.c.b16 %v1489, %v1487
        %v1756 = vpack.c.b16 %v1492, %v1490
        %v1757 = vpack.c.b16 %v1493, %v1491
        %v1758 = vpack.c.b16 %v1496, %v1494
        %v1759 = vpack.c.b16 %v1497, %v1495
        %v1760 = vpack.c.b16 %v1500, %v1498
        %v1761 = vpack.c.b16 %v1501, %v1499
        %v1762 = vpack.c.b16 %v1504, %v1502
        %v1763 = vpack.c.b16 %v1505, %v1503
        %v1764 = vpack.c.b16 %v1508, %v1506
        %v1765 = vpack.c.b16 %v1509, %v1507
        %2022 = vmatprep.subr.bf16.mxu0 %v1511
        %2023 = vmatpush1.bf16.msra.mxu0 %v1510
        %2024 = vmatprep.subr.bf16.mxu0 %v1513
        %2025 = vmatpush1.bf16.msra.mxu0 %v1512
        %2026 = vmatprep.subr.bf16.mxu0 %v1515
        %2027 = vmatpush1.bf16.msra.mxu0 %v1514
        %2028 = vmatprep.subr.bf16.mxu0 %v1517
        %2029 = vmatpush1.bf16.msra.mxu0 %v1516
        %2030 = vmatprep.subr.bf16.mxu0 %v1519
        %2031 = vmatpush1.bf16.msra.mxu0 %v1518
        %2032 = vmatprep.subr.bf16.mxu0 %v1521
        %2033 = vmatpush1.bf16.msra.mxu0 %v1520
        %2034 = vmatprep.subr.bf16.mxu0 %v1523
        %2035 = vmatpush1.bf16.msra.mxu0 %v1522
        %2036 = vmatprep.subr.bf16.mxu0 %v1525
        %2037 = vmatpush1.bf16.msra.mxu0 %v1524
        %2038 = vmatprep.subr.bf16.mxu0 %v1527
        %2039 = vmatpush1.bf16.msra.mxu0 %v1526
        %2040 = vmatprep.subr.bf16.mxu0 %v1529
        %2041 = vmatpush1.bf16.msra.mxu0 %v1528
        %2042 = vmatprep.subr.bf16.mxu0 %v1531
        %2043 = vmatpush1.bf16.msra.mxu0 %v1530
        %2044 = vmatprep.subr.bf16.mxu0 %v1533
        %2045 = vmatpush1.bf16.msra.mxu0 %v1532
        %2046 = vmatprep.subr.bf16.mxu0 %v1535
        %2047 = vmatpush1.bf16.msra.mxu0 %v1534
        %2048 = vmatprep.subr.bf16.mxu0 %v1537
        %2049 = vmatpush1.bf16.msra.mxu0 %v1536
        %2050 = vmatprep.subr.bf16.mxu0 %v1539
        %2051 = vmatpush1.bf16.msra.mxu0 %v1538
        %2052 = vmatprep.subr.bf16.mxu0 %v1541
        %2053 = vmatpush1.bf16.msra.mxu0 %v1540
        %2054 = vmatprep.mubr.bf16.mxu0 %v711
        %2055 = vmatmul.mubr.bf16.gmra.mrb[0].mxu0 %v710
        %v2056 = vpop.f32.mrb[0].mxu0
        %v2057 = vadd.f32 %v679, %v2056
        %v2058 = vpop.f32.mrb[0].mxu0
        %v2059 = vadd.f32 %v683, %v2058
        %v2060 = vpop.f32.mrb[0].mxu0
        %v2061 = vpop.f32.mrb[0].mxu0
        %2062 = vdwg.mxu0
        %2063 = vmatprep.subr.bf16.mxu0 %v1543
        %2064 = vmatpush1.bf16.msra.mxu0 %v1542
        %2065 = vmatprep.subr.bf16.mxu0 %v1545
        %2066 = vmatpush1.bf16.msra.mxu0 %v1544
        %2067 = vmatprep.subr.bf16.mxu0 %v1547
        %2068 = vmatpush1.bf16.msra.mxu0 %v1546
        %2069 = vmatprep.subr.bf16.mxu0 %v1549
        %2070 = vmatpush1.bf16.msra.mxu0 %v1548
        %2071 = vmatprep.subr.bf16.mxu0 %v1551
        %2072 = vmatpush1.bf16.msra.mxu0 %v1550
        %2073 = vmatprep.subr.bf16.mxu0 %v1553
        %2074 = vmatpush1.bf16.msra.mxu0 %v1552
        %2075 = vmatprep.subr.bf16.mxu0 %v1555
        %2076 = vmatpush1.bf16.msra.mxu0 %v1554
        %2077 = vmatprep.subr.bf16.mxu0 %v1557
        %2078 = vmatpush1.bf16.msra.mxu0 %v1556
        %2079 = vmatprep.subr.bf16.mxu0 %v1559
        %2080 = vmatpush1.bf16.msra.mxu0 %v1558
        %2081 = vmatprep.subr.bf16.mxu0 %v1561
        %2082 = vmatpush1.bf16.msra.mxu0 %v1560
        %2083 = vmatprep.subr.bf16.mxu0 %v1563
        %2084 = vmatpush1.bf16.msra.mxu0 %v1562
        %2085 = vmatprep.subr.bf16.mxu0 %v1565
        %2086 = vmatpush1.bf16.msra.mxu0 %v1564
        %2087 = vmatprep.subr.bf16.mxu0 %v1567
        %2088 = vmatpush1.bf16.msra.mxu0 %v1566
        %2089 = vmatprep.subr.bf16.mxu0 %v1569
        %2090 = vmatpush1.bf16.msra.mxu0 %v1568
        %2091 = vmatprep.subr.bf16.mxu0 %v1571
        %2092 = vmatpush1.bf16.msra.mxu0 %v1570
        %2093 = vmatprep.subr.bf16.mxu0 %v1573
        %2094 = vmatpush1.bf16.msra.mxu0 %v1572
        %2095 = vmatprep.mubr.bf16.mxu0 %v713
        %2096 = vmatmul.mubr.bf16.gmra.mrb[0].mxu0 %v712
        %v2097 = vpop.f32.mrb[0].mxu0
        %v2098 = vadd.f32 %v2057, %v2097
        %v2099 = vpop.f32.mrb[0].mxu0
        %v2100 = vadd.f32 %v2059, %v2099
        %v2101 = vpop.f32.mrb[0].mxu0
        %v2102 = vpop.f32.mrb[0].mxu0
        %2103 = vdwg.mxu0
        %2104 = vmatprep.subr.bf16.mxu0 %v1575
        %2105 = vmatpush1.bf16.msra.mxu0 %v1574
        %2106 = vmatprep.subr.bf16.mxu0 %v1577
        %2107 = vmatpush1.bf16.msra.mxu0 %v1576
        %2108 = vmatprep.subr.bf16.mxu0 %v1579
        %2109 = vmatpush1.bf16.msra.mxu0 %v1578
        %2110 = vmatprep.subr.bf16.mxu0 %v1581
        %2111 = vmatpush1.bf16.msra.mxu0 %v1580
        %2112 = vmatprep.subr.bf16.mxu0 %v1583
        %2113 = vmatpush1.bf16.msra.mxu0 %v1582
        %2114 = vmatprep.subr.bf16.mxu0 %v1585
        %2115 = vmatpush1.bf16.msra.mxu0 %v1584
        %2116 = vmatprep.subr.bf16.mxu0 %v1587
        %2117 = vmatpush1.bf16.msra.mxu0 %v1586
        %2118 = vmatprep.subr.bf16.mxu0 %v1589
        %2119 = vmatpush1.bf16.msra.mxu0 %v1588
        %2120 = vmatprep.subr.bf16.mxu0 %v1591
        %2121 = vmatpush1.bf16.msra.mxu0 %v1590
        %2122 = vmatprep.subr.bf16.mxu0 %v1593
        %2123 = vmatpush1.bf16.msra.mxu0 %v1592
        %2124 = vmatprep.subr.bf16.mxu0 %v1595
        %2125 = vmatpush1.bf16.msra.mxu0 %v1594
        %2126 = vmatprep.subr.bf16.mxu0 %v1597
        %2127 = vmatpush1.bf16.msra.mxu0 %v1596
        %2128 = vmatprep.subr.bf16.mxu0 %v1599
        %2129 = vmatpush1.bf16.msra.mxu0 %v1598
        %2130 = vmatprep.subr.bf16.mxu0 %v1601
        %2131 = vmatpush1.bf16.msra.mxu0 %v1600
        %2132 = vmatprep.subr.bf16.mxu0 %v1603
        %2133 = vmatpush1.bf16.msra.mxu0 %v1602
        %2134 = vmatprep.subr.bf16.mxu0 %v1605
        %2135 = vmatpush1.bf16.msra.mxu0 %v1604
        %2136 = vmatprep.mubr.bf16.mxu0 %v715
        %2137 = vmatmul.mubr.bf16.gmra.mrb[0].mxu0 %v714
        %v2138 = vpop.f32.mrb[0].mxu0
        %v2139 = vadd.f32 %v2098, %v2138
        %v2140 = vpop.f32.mrb[0].mxu0
        %v2141 = vadd.f32 %v2100, %v2140
        %v2142 = vpop.f32.mrb[0].mxu0
        %v2143 = vpop.f32.mrb[0].mxu0
        %2144 = vdwg.mxu0
        %2145 = vmatprep.subr.bf16.mxu0 %v1607
        %2146 = vmatpush1.bf16.msra.mxu0 %v1606
        %2147 = vmatprep.subr.bf16.mxu0 %v1609
        %2148 = vmatpush1.bf16.msra.mxu0 %v1608
        %2149 = vmatprep.subr.bf16.mxu0 %v1611
        %2150 = vmatpush1.bf16.msra.mxu0 %v1610
        %2151 = vmatprep.subr.bf16.mxu0 %v1613
        %2152 = vmatpush1.bf16.msra.mxu0 %v1612
        %2153 = vmatprep.subr.bf16.mxu0 %v1615
        %2154 = vmatpush1.bf16.msra.mxu0 %v1614
        %2155 = vmatprep.subr.bf16.mxu0 %v1617
        %2156 = vmatpush1.bf16.msra.mxu0 %v1616
        %2157 = vmatprep.subr.bf16.mxu0 %v1619
        %2158 = vmatpush1.bf16.msra.mxu0 %v1618
        %2159 = vmatprep.subr.bf16.mxu0 %v1621
        %2160 = vmatpush1.bf16.msra.mxu0 %v1620
        %2161 = vmatprep.subr.bf16.mxu0 %v1623
        %2162 = vmatpush1.bf16.msra.mxu0 %v1622
        %2163 = vmatprep.subr.bf16.mxu0 %v1625
        %2164 = vmatpush1.bf16.msra.mxu0 %v1624
        %2165 = vmatprep.subr.bf16.mxu0 %v1627
        %2166 = vmatpush1.bf16.msra.mxu0 %v1626
        %2167 = vmatprep.subr.bf16.mxu0 %v1629
        %2168 = vmatpush1.bf16.msra.mxu0 %v1628
        %2169 = vmatprep.subr.bf16.mxu0 %v1631
        %2170 = vmatpush1.bf16.msra.mxu0 %v1630
        %2171 = vmatprep.subr.bf16.mxu0 %v1633
        %2172 = vmatpush1.bf16.msra.mxu0 %v1632
        %2173 = vmatprep.subr.bf16.mxu0 %v1635
        %2174 = vmatpush1.bf16.msra.mxu0 %v1634
        %2175 = vmatprep.subr.bf16.mxu0 %v1637
        %2176 = vmatpush1.bf16.msra.mxu0 %v1636
        %2177 = vmatprep.mubr.bf16.mxu0 %v717
        %2178 = vmatmul.mubr.bf16.gmra.mrb[0].mxu0 %v716
        %v2179 = vpop.f32.mrb[0].mxu0
        %v2180 = vadd.f32 %v2139, %v2179
        %v2181 = vpop.f32.mrb[0].mxu0
        %v2182 = vadd.f32 %v2141, %v2181
        %v2183 = vpop.f32.mrb[0].mxu0
        %v2184 = vpop.f32.mrb[0].mxu0
        %2185 = vdwg.mxu0
        %2186 = vmatprep.subr.bf16.mxu0 %v1639
        %2187 = vmatpush1.bf16.msra.mxu0 %v1638
        %2188 = vmatprep.subr.bf16.mxu0 %v1641
        %2189 = vmatpush1.bf16.msra.mxu0 %v1640
        %2190 = vmatprep.subr.bf16.mxu0 %v1643
        %2191 = vmatpush1.bf16.msra.mxu0 %v1642
        %2192 = vmatprep.subr.bf16.mxu0 %v1645
        %2193 = vmatpush1.bf16.msra.mxu0 %v1644
        %2194 = vmatprep.subr.bf16.mxu0 %v1647
        %2195 = vmatpush1.bf16.msra.mxu0 %v1646
        %2196 = vmatprep.subr.bf16.mxu0 %v1649
        %2197 = vmatpush1.bf16.msra.mxu0 %v1648
        %2198 = vmatprep.subr.bf16.mxu0 %v1651
        %2199 = vmatpush1.bf16.msra.mxu0 %v1650
        %2200 = vmatprep.subr.bf16.mxu0 %v1653
        %2201 = vmatpush1.bf16.msra.mxu0 %v1652
        %2202 = vmatprep.subr.bf16.mxu0 %v1655
        %2203 = vmatpush1.bf16.msra.mxu0 %v1654
        %2204 = vmatprep.subr.bf16.mxu0 %v1657
        %2205 = vmatpush1.bf16.msra.mxu0 %v1656
        %2206 = vmatprep.subr.bf16.mxu0 %v1659
        %2207 = vmatpush1.bf16.msra.mxu0 %v1658
        %2208 = vmatprep.subr.bf16.mxu0 %v1661
        %2209 = vmatpush1.bf16.msra.mxu0 %v1660
        %2210 = vmatprep.subr.bf16.mxu0 %v1663
        %2211 = vmatpush1.bf16.msra.mxu0 %v1662
        %2212 = vmatprep.subr.bf16.mxu0 %v1665
        %2213 = vmatpush1.bf16.msra.mxu0 %v1664
        %2214 = vmatprep.subr.bf16.mxu0 %v1667
        %2215 = vmatpush1.bf16.msra.mxu0 %v1666
        %2216 = vmatprep.subr.bf16.mxu0 %v1669
        %2217 = vmatpush1.bf16.msra.mxu0 %v1668
        %2218 = vmatprep.mubr.bf16.mxu0 %v719
        %2219 = vmatmul.mubr.bf16.gmra.mrb[0].mxu0 %v718
        %v2220 = vpop.f32.mrb[0].mxu0
        %v2221 = vadd.f32 %v2180, %v2220
        %v2222 = vpop.f32.mrb[0].mxu0
        %v2223 = vadd.f32 %v2182, %v2222
        %v2224 = vpop.f32.mrb[0].mxu0
        %v2225 = vpop.f32.mrb[0].mxu0
        %2226 = vdwg.mxu0
        %2227 = vmatprep.subr.bf16.mxu0 %v1671
        %2228 = vmatpush1.bf16.msra.mxu0 %v1670
        %2229 = vmatprep.subr.bf16.mxu0 %v1673
        %2230 = vmatpush1.bf16.msra.mxu0 %v1672
        %2231 = vmatprep.subr.bf16.mxu0 %v1675
        %2232 = vmatpush1.bf16.msra.mxu0 %v1674
        %2233 = vmatprep.subr.bf16.mxu0 %v1677
        %2234 = vmatpush1.bf16.msra.mxu0 %v1676
        %2235 = vmatprep.subr.bf16.mxu0 %v1679
        %2236 = vmatpush1.bf16.msra.mxu0 %v1678
        %2237 = vmatprep.subr.bf16.mxu0 %v1681
        %2238 = vmatpush1.bf16.msra.mxu0 %v1680
        %2239 = vmatprep.subr.bf16.mxu0 %v1683
        %2240 = vmatpush1.bf16.msra.mxu0 %v1682
        %2241 = vmatprep.subr.bf16.mxu0 %v1685
        %2242 = vmatpush1.bf16.msra.mxu0 %v1684
        %2243 = vmatprep.subr.bf16.mxu0 %v1687
        %2244 = vmatpush1.bf16.msra.mxu0 %v1686
        %2245 = vmatprep.subr.bf16.mxu0 %v1689
        %2246 = vmatpush1.bf16.msra.mxu0 %v1688
        %2247 = vmatprep.subr.bf16.mxu0 %v1691
        %2248 = vmatpush1.bf16.msra.mxu0 %v1690
        %2249 = vmatprep.subr.bf16.mxu0 %v1693
        %2250 = vmatpush1.bf16.msra.mxu0 %v1692
        %2251 = vmatprep.subr.bf16.mxu0 %v1695
        %2252 = vmatpush1.bf16.msra.mxu0 %v1694
        %2253 = vmatprep.subr.bf16.mxu0 %v1697
        %2254 = vmatpush1.bf16.msra.mxu0 %v1696
        %2255 = vmatprep.subr.bf16.mxu0 %v1699
        %2256 = vmatpush1.bf16.msra.mxu0 %v1698
        %2257 = vmatprep.subr.bf16.mxu0 %v1701
        %2258 = vmatpush1.bf16.msra.mxu0 %v1700
        %2259 = vmatprep.mubr.bf16.mxu0 %v721
        %2260 = vmatmul.mubr.bf16.gmra.mrb[0].mxu0 %v720
        %v2261 = vpop.f32.mrb[0].mxu0
        %v2262 = vadd.f32 %v2221, %v2261
        %v2263 = vpop.f32.mrb[0].mxu0
        %v2264 = vadd.f32 %v2223, %v2263
        %v2265 = vpop.f32.mrb[0].mxu0
        %v2266 = vpop.f32.mrb[0].mxu0
        %2267 = vdwg.mxu0
        %2268 = vmatprep.subr.bf16.mxu0 %v1703
        %2269 = vmatpush1.bf16.msra.mxu0 %v1702
        %2270 = vmatprep.subr.bf16.mxu0 %v1705
        %2271 = vmatpush1.bf16.msra.mxu0 %v1704
        %2272 = vmatprep.subr.bf16.mxu0 %v1707
        %2273 = vmatpush1.bf16.msra.mxu0 %v1706
        %2274 = vmatprep.subr.bf16.mxu0 %v1709
        %2275 = vmatpush1.bf16.msra.mxu0 %v1708
        %2276 = vmatprep.subr.bf16.mxu0 %v1711
        %2277 = vmatpush1.bf16.msra.mxu0 %v1710
        %2278 = vmatprep.subr.bf16.mxu0 %v1713
        %2279 = vmatpush1.bf16.msra.mxu0 %v1712
        %2280 = vmatprep.subr.bf16.mxu0 %v1715
        %2281 = vmatpush1.bf16.msra.mxu0 %v1714
        %2282 = vmatprep.subr.bf16.mxu0 %v1717
        %2283 = vmatpush1.bf16.msra.mxu0 %v1716
        %2284 = vmatprep.subr.bf16.mxu0 %v1719
        %2285 = vmatpush1.bf16.msra.mxu0 %v1718
        %2286 = vmatprep.subr.bf16.mxu0 %v1721
        %2287 = vmatpush1.bf16.msra.mxu0 %v1720
        %2288 = vmatprep.subr.bf16.mxu0 %v1723
        %2289 = vmatpush1.bf16.msra.mxu0 %v1722
        %2290 = vmatprep.subr.bf16.mxu0 %v1725
        %2291 = vmatpush1.bf16.msra.mxu0 %v1724
        %2292 = vmatprep.subr.bf16.mxu0 %v1727
        %2293 = vmatpush1.bf16.msra.mxu0 %v1726
        %2294 = vmatprep.subr.bf16.mxu0 %v1729
        %2295 = vmatpush1.bf16.msra.mxu0 %v1728
        %2296 = vmatprep.subr.bf16.mxu0 %v1731
        %2297 = vmatpush1.bf16.msra.mxu0 %v1730
        %2298 = vmatprep.subr.bf16.mxu0 %v1733
        %2299 = vmatpush1.bf16.msra.mxu0 %v1732
        %2300 = vmatprep.mubr.bf16.mxu0 %v723
        %2301 = vmatmul.mubr.bf16.gmra.mrb[0].mxu0 %v722
        %v2302 = vpop.f32.mrb[0].mxu0
        %v2303 = vadd.f32 %v2262, %v2302
        %v2304 = vpop.f32.mrb[0].mxu0
        %v2305 = vadd.f32 %v2264, %v2304
        %v2306 = vpop.f32.mrb[0].mxu0
        %v2307 = vpop.f32.mrb[0].mxu0
        %2308 = vdwg.mxu0
        %2309 = vmatprep.subr.bf16.mxu0 %v1735
        %2310 = vmatpush1.bf16.msra.mxu0 %v1734
        %2311 = vmatprep.subr.bf16.mxu0 %v1737
        %2312 = vmatpush1.bf16.msra.mxu0 %v1736
        %2313 = vmatprep.subr.bf16.mxu0 %v1739
        %2314 = vmatpush1.bf16.msra.mxu0 %v1738
        %2315 = vmatprep.subr.bf16.mxu0 %v1741
        %2316 = vmatpush1.bf16.msra.mxu0 %v1740
        %2317 = vmatprep.subr.bf16.mxu0 %v1743
        %2318 = vmatpush1.bf16.msra.mxu0 %v1742
        %2319 = vmatprep.subr.bf16.mxu0 %v1745
        %2320 = vmatpush1.bf16.msra.mxu0 %v1744
        %2321 = vmatprep.subr.bf16.mxu0 %v1747
        %2322 = vmatpush1.bf16.msra.mxu0 %v1746
        %2323 = vmatprep.subr.bf16.mxu0 %v1749
        %2324 = vmatpush1.bf16.msra.mxu0 %v1748
        %2325 = vmatprep.subr.bf16.mxu0 %v1751
        %2326 = vmatpush1.bf16.msra.mxu0 %v1750
        %2327 = vmatprep.subr.bf16.mxu0 %v1753
        %2328 = vmatpush1.bf16.msra.mxu0 %v1752
        %2329 = vmatprep.subr.bf16.mxu0 %v1755
        %2330 = vmatpush1.bf16.msra.mxu0 %v1754
        %2331 = vmatprep.subr.bf16.mxu0 %v1757
        %2332 = vmatpush1.bf16.msra.mxu0 %v1756
        %2333 = vmatprep.subr.bf16.mxu0 %v1759
        %2334 = vmatpush1.bf16.msra.mxu0 %v1758
        %2335 = vmatprep.subr.bf16.mxu0 %v1761
        %2336 = vmatpush1.bf16.msra.mxu0 %v1760
        %2337 = vmatprep.subr.bf16.mxu0 %v1763
        %2338 = vmatpush1.bf16.msra.mxu0 %v1762
        %2339 = vmatprep.subr.bf16.mxu0 %v1765
        %2340 = vmatpush1.bf16.msra.mxu0 %v1764
        %2341 = vmatprep.mubr.bf16.mxu0 %v725
        %2342 = vmatmul.mubr.bf16.gmra.mrb[0].mxu0 %v724
        %v2343 = vpop.f32.mrb[0].mxu0
        %v2344 = vadd.f32 %v2303, %v2343
        %v2345 = vpop.f32.mrb[0].mxu0
        %v2346 = vadd.f32 %v2305, %v2345
        %v2347 = vpop.f32.mrb[0].mxu0
        %v2348 = vpop.f32.mrb[0].mxu0
        %2349 = vdwg.mxu0
        %v2350 = vmax.f32 %v2344, 0.0
        %v2351 = vmax.f32 %v2346, 0.0
        %2352 = vst [vmem:[%s397] sm:$0xff] %v2350
        %2353 = vst [vmem:[%s397 + $0x8] sm:$0xff] %v2351
        %v2354 = vpack.c.bf16 %v2350, %v2350
        %v2355 = vpack.c.bf16 %v2351, %v2351
        %v2356 = vld [vmem:[%s357] sm:$0xf]
        %v2357 = vld [vmem:[%s357 + $0x4] sm:$0xf]
        %v2358 = vld [vmem:[%s357 + $0x8] sm:$0xf]
        %v2359 = vld [vmem:[%s357 + $0xc] sm:$0xf]
        %v2360 = vld [vmem:[%s357 + $0x10] sm:$0xf]
        %v2361 = vld [vmem:[%s357 + $0x14] sm:$0xf]
        %v2362 = vld [vmem:[%s357 + $0x18] sm:$0xf]
        %v2363 = vld [vmem:[%s357 + $0x1c] sm:$0xf]
        %v2364 = vld [vmem:[%s357 + $0x20] sm:$0xf]
        %v2365 = vld [vmem:[%s357 + $0x24] sm:$0xf]
        %v2366 = vld [vmem:[%s357 + $0x28] sm:$0xf]
        %v2367 = vld [vmem:[%s357 + $0x2c] sm:$0xf]
        %v2368 = vld [vmem:[%s357 + $0x30] sm:$0xf]
        %v2369 = vld [vmem:[%s357 + $0x34] sm:$0xf]
        %v2370 = vld [vmem:[%s357 + $0x38] sm:$0xf]
        %v2371 = vld [vmem:[%s357 + $0x3c] sm:$0xf]
        %v2372 = vld [vmem:[%s357 + $0x40] sm:$0xf]
        %v2373 = vld [vmem:[%s357 + $0x44] sm:$0xf]
        %v2374 = vld [vmem:[%s357 + $0x48] sm:$0xf]
        %v2375 = vld [vmem:[%s357 + $0x4c] sm:$0xf]
        %v2376 = vld [vmem:[%s357 + $0x50] sm:$0xf]
        %v2377 = vld [vmem:[%s357 + $0x54] sm:$0xf]
        %v2378 = vld [vmem:[%s357 + $0x58] sm:$0xf]
        %v2379 = vld [vmem:[%s357 + $0x5c] sm:$0xf]
        %v2380 = vld [vmem:[%s357 + $0x60] sm:$0xf]
        %v2381 = vld [vmem:[%s357 + $0x64] sm:$0xf]
        %v2382 = vld [vmem:[%s357 + $0x68] sm:$0xf]
        %v2383 = vld [vmem:[%s357 + $0x6c] sm:$0xf]
        %v2384 = vld [vmem:[%s357 + $0x70] sm:$0xf]
        %v2385 = vld [vmem:[%s357 + $0x74] sm:$0xf]
        %v2386 = vld [vmem:[%s357 + $0x78] sm:$0xf]
        %v2387 = vld [vmem:[%s357 + $0x7c] sm:$0xf]
        %v2388 = vld [vmem:[#allocation10] sm:$0x1]
        %p2389 = scmp.eq.s32.totalorder %s36, 0
        %s2390 = scalar_select %p2389, 1, 0
        %s2391 = scvt.s32.f32 %s2390
        %v2392 = vstv %s2391
        %v2393 = vmul.f32 %v2388, %v2392
        %v2395 = vlaneseq
        %v2396 = vshrl.u32 %v2395, 7
        %v2397 = vsub.s32 0, %v2396
        %v2398 = vrot.slane %v2393, %v2397
        %v2432 = vunpack.c.l.b16 %v2356
        %v2433 = vunpack.c.l.b16 %v2357
        %v2434 = vunpack.c.l.b16 %v2358
        %v2435 = vunpack.c.l.b16 %v2359
        %v2436 = vunpack.c.l.b16 %v2360
        %v2437 = vunpack.c.l.b16 %v2361
        %v2438 = vunpack.c.l.b16 %v2362
        %v2439 = vunpack.c.l.b16 %v2363
        %v2440 = vunpack.c.l.b16 %v2364
        %v2441 = vunpack.c.l.b16 %v2365
        %v2442 = vunpack.c.l.b16 %v2366
        %v2443 = vunpack.c.l.b16 %v2367
        %v2444 = vunpack.c.l.b16 %v2368
        %v2445 = vunpack.c.l.b16 %v2369
        %v2446 = vunpack.c.l.b16 %v2370
        %v2447 = vunpack.c.l.b16 %v2371
        %v2448 = vunpack.c.l.b16 %v2372
        %v2449 = vunpack.c.l.b16 %v2373
        %v2450 = vunpack.c.l.b16 %v2374
        %v2451 = vunpack.c.l.b16 %v2375
        %v2452 = vunpack.c.l.b16 %v2376
        %v2453 = vunpack.c.l.b16 %v2377
        %v2454 = vunpack.c.l.b16 %v2378
        %v2455 = vunpack.c.l.b16 %v2379
        %v2456 = vunpack.c.l.b16 %v2380
        %v2457 = vunpack.c.l.b16 %v2381
        %v2458 = vunpack.c.l.b16 %v2382
        %v2459 = vunpack.c.l.b16 %v2383
        %v2460 = vunpack.c.l.b16 %v2384
        %v2461 = vunpack.c.l.b16 %v2385
        %v2462 = vunpack.c.l.b16 %v2386
        %v2463 = vunpack.c.l.b16 %v2387
        %v2464 = vpack.c.b16 %v2433, %v2432
        %v2465 = vpack.c.b16 %v2435, %v2434
        %v2466 = vpack.c.b16 %v2437, %v2436
        %v2467 = vpack.c.b16 %v2439, %v2438
        %v2468 = vpack.c.b16 %v2441, %v2440
        %v2469 = vpack.c.b16 %v2443, %v2442
        %v2470 = vpack.c.b16 %v2445, %v2444
        %v2471 = vpack.c.b16 %v2447, %v2446
        %v2472 = vpack.c.b16 %v2449, %v2448
        %v2473 = vpack.c.b16 %v2451, %v2450
        %v2474 = vpack.c.b16 %v2453, %v2452
        %v2475 = vpack.c.b16 %v2455, %v2454
        %v2476 = vpack.c.b16 %v2457, %v2456
        %v2477 = vpack.c.b16 %v2459, %v2458
        %v2478 = vpack.c.b16 %v2461, %v2460
        %v2479 = vpack.c.b16 %v2463, %v2462
        %2496 = vmatprep.subr.bf16.mxu0 0
        %2497 = vmatpush1.bf16.msra.mxu0 %v2464
        %2498 = vmatprep.subr.bf16.mxu0 0
        %2499 = vmatpush1.bf16.msra.mxu0 %v2465
        %2500 = vmatprep.subr.bf16.mxu0 0
        %2501 = vmatpush1.bf16.msra.mxu0 %v2466
        %2502 = vmatprep.subr.bf16.mxu0 0
        %2503 = vmatpush1.bf16.msra.mxu0 %v2467
        %2504 = vmatprep.subr.bf16.mxu0 0
        %2505 = vmatpush1.bf16.msra.mxu0 %v2468
        %2506 = vmatprep.subr.bf16.mxu0 0
        %2507 = vmatpush1.bf16.msra.mxu0 %v2469
        %2508 = vmatprep.subr.bf16.mxu0 0
        %2509 = vmatpush1.bf16.msra.mxu0 %v2470
        %2510 = vmatprep.subr.bf16.mxu0 0
        %2511 = vmatpush1.bf16.msra.mxu0 %v2471
        %2512 = vmatprep.subr.bf16.mxu0 0
        %2513 = vmatpush1.bf16.msra.mxu0 %v2472
        %2514 = vmatprep.subr.bf16.mxu0 0
        %2515 = vmatpush1.bf16.msra.mxu0 %v2473
        %2516 = vmatprep.subr.bf16.mxu0 0
        %2517 = vmatpush1.bf16.msra.mxu0 %v2474
        %2518 = vmatprep.subr.bf16.mxu0 0
        %2519 = vmatpush1.bf16.msra.mxu0 %v2475
        %2520 = vmatprep.subr.bf16.mxu0 0
        %2521 = vmatpush1.bf16.msra.mxu0 %v2476
        %2522 = vmatprep.subr.bf16.mxu0 0
        %2523 = vmatpush1.bf16.msra.mxu0 %v2477
        %2524 = vmatprep.subr.bf16.mxu0 0
        %2525 = vmatpush1.bf16.msra.mxu0 %v2478
        %2526 = vmatprep.subr.bf16.mxu0 0
        %2527 = vmatpush1.bf16.msra.mxu0 %v2479
        %2528 = vmatprep.mubr.bf16.mxu0 %v2355
        %2529 = vmatmul.mubr.bf16.gmra.mrb[0].mxu0 %v2354
        %v2530 = vpop.f32.mrb[0].mxu0
        %v2531 = vadd.f32 %v2398, %v2530
        %v2532 = vpop.f32.mrb[0].mxu0
        %v2533 = vpop.f32.mrb[0].mxu0
        %v2534 = vpop.f32.mrb[0].mxu0
        %2535 = vdwg.mxu0
        %2536 = vst [vmem:[%s404] sm:$0xff] %v2531
        %s2537 = sand.u32 %s178, 1
        %s2538 = scalar_lea.sflag [#allocation4], %s2537
        %s2539 = sand.u32 %s178, 1
        %s2540 = smul.addr %s2539, 16
        %s2541 = scalar_lea.vmem [#allocation11], %s2540
        %s2542 = sand.u32 %s206, 1
        %s2543 = scalar_lea.sflag [#allocation13], %s2542
        %s2544 = sand.u32 %s206, 1
        %s2545 = smul.addr %s2544, 8
        %s2546 = scalar_lea.vmem [#allocation12], %s2545
        // Predicated region
        $region61: #{tpu_custom_call.1} parent=39 // pred_check
          %p2547 = pneg %p188
        $region62: #{tpu_custom_call.1} parent=39 // pred_check_branch
          %2549 = sbr.rel (%p2547) target = $region64
        $region63: #{tpu_custom_call.1} parent=39 // pred_region
          %s2550 = smul.u32 2, %s36
          %s2552 = ssub.s32 256, 256
          %2553 = vsyncadd %s2538, %s2552
          %s2554 = smul.addr %s35, 4
          %s2555 = sadd.s32 %s2550, %s2554
          %s2556 = smul.addr %s2555, 128
          %s2557 = scalar_lea.hbm %s5, %s2556
          %s2559 = sshll.u32 %s2541, 4
          %s2560 = int_to_ptr.vmem [resolvable:$true] %s2559
          %2562 = dma.vmem_to_hbm [thread:$0]  %s2560, 256, %s2557, %s2538
        $region64: #{tpu_custom_call.1} parent=39 // pred_fallthru
          _
        // Predicated region
        $region65: #{tpu_custom_call.1} parent=39 // pred_check
          %p2563 = pneg %p216
        $region66: #{tpu_custom_call.1} parent=39 // pred_check_branch
          %2565 = sbr.rel (%p2563) target = $region68
        $region67: #{tpu_custom_call.1} parent=39 // pred_region
          %s2567 = ssub.s32 128, 128
          %2568 = vsyncadd %s2543, %s2567
          %s2569 = sadd.s32 %s35, %s36
          %s2570 = smul.addr %s2569, 128
          %s2571 = scalar_lea.hbm %s6, %s2570
          %s2573 = sshll.u32 %s2546, 4
          %s2574 = int_to_ptr.vmem [resolvable:$true] %s2573
          %2576 = dma.vmem_to_hbm [thread:$0]  %s2574, 128, %s2571, %s2543
        $region68: #{tpu_custom_call.1} parent=39 // pred_fallthru
          _
      $region40: #{tpu_custom_call.1} parent=5 // pred_fallthru
        _
      %p2577 = scmp.le.s32.totalorder 2, %s26
      // Predicated region
      $region69: #{tpu_custom_call.1} parent=5 // pred_check
        %p2578 = pneg %p2577
      $region70: #{tpu_custom_call.1} parent=5 // pred_check_branch
        %2580 = sbr.rel (%p2578) target = $region72
      $region71: #{tpu_custom_call.1} parent=5 // pred_region
        %s2581 = ssub.s32 %s26, 2
        // Predicated region
        $region73: #{tpu_custom_call.1} parent=71 // pred_check
          %p2582 = pneg %p194
        $region74: #{tpu_custom_call.1} parent=71 // pred_check_branch
          %2584 = sbr.rel (%p2582) target = $region76
        $region75: #{tpu_custom_call.1} parent=71 // pred_region
          %s2585 = sand.u32 %s179, 1
          %s2586 = scalar_lea.sflag [#allocation4], %s2585
          %s2587 = sand.u32 %s179, 1
          %s2588 = smul.addr %s2587, 16
          %s2589 = scalar_lea.vmem [#allocation11], %s2588
          %2590 = dma.done %s2586, 256
        $region76: #{tpu_custom_call.1} parent=71 // pred_fallthru
          _
        // Predicated region
        $region77: #{tpu_custom_call.1} parent=71 // pred_check
          %p2591 = pneg %p222
        $region78: #{tpu_custom_call.1} parent=71 // pred_check_branch
          %2593 = sbr.rel (%p2591) target = $region80
        $region79: #{tpu_custom_call.1} parent=71 // pred_region
          %s2594 = sand.u32 %s207, 1
          %s2595 = scalar_lea.sflag [#allocation13], %s2594
          %s2596 = sand.u32 %s207, 1
          %s2597 = smul.addr %s2596, 8
          %s2598 = scalar_lea.vmem [#allocation12], %s2597
          %2599 = dma.done %s2595, 128
        $region80: #{tpu_custom_call.1} parent=71 // pred_fallthru
          _
      $region72: #{tpu_custom_call.1} parent=5 // pred_fallthru
        _
    $region6: #{tpu_custom_call.1} parent=1 // loop_footer
      %s30 = sadd.s32 1, %s26
    $region7: #{tpu_custom_call.1} parent=1 // loop_footer_branch
      %25 = sbr.rel target = $region3
    $region8: #{tpu_custom_call.1} parent=1 // loop_exit
      _
    %2600 = vsyncpa [#allocation3], 1
    %s2601 = scalar_lea.sflag [#allocation3], 1
    %2602 = vsyncpa %s2601, 1
    %2603 = vsyncpa [#allocation6], 1
    %s2604 = scalar_lea.sflag [#allocation6], 1
    %2605 = vsyncpa %s2604, 1
    %2606 = vsyncpa [#allocation9], 1
    %s2607 = scalar_lea.sflag [#allocation9], 1
    %2608 = vsyncpa %s2607, 1
    %2609 = vsyncpa [#allocation4], 1
    %s2610 = scalar_lea.sflag [#allocation4], 1
    %2611 = vsyncpa %s2610, 1
    %2612 = vsyncpa [#allocation13], 1
    %s2613 = scalar_lea.sflag [#allocation13], 1
    %2614 = vsyncpa %s2613, 1

</llo_original>
